<compile_context>
chip_gen: v7x
topology: tpu7x:2x2x1
jax: 0.10.0
libtpu: 0.0.40
codegen_flags: <defaults>
</compile_context>

<pallas_src>
import functools

import numpy as np
import jax
import jax.numpy as jnp
from jax.experimental import pallas as pl
from jax.experimental.pallas import tpu as pltpu  # noqa: F401  (TPU backend)


# ----------------------------------------------------------------------------
# Fused Pallas kernel: chained (B, F_in) @ (F_in, F_out) matmuls in VMEM
# ----------------------------------------------------------------------------
def _decoder_fused_kernel(x_ref, *refs):
    # refs = (w0, b0, w1, b1, ..., w_{n-1}, b_{n-1}, o_ref)
    *wb_refs, o_ref = refs
    n_layers = len(wb_refs) // 2

    h = x_ref[...]                                   # (B, F0) f32, stays on-chip
    for idx in range(n_layers):                      # static unroll
        w = wb_refs[2 * idx][...]                    # (F_in, F_out)
        b = wb_refs[2 * idx + 1][...]                # (1, F_out)
        h = jnp.dot(h, w, preferred_element_type=jnp.float32) + b
        # TODO(synk): Dropout(0.05) before each activation is identity (eval).
        if idx == n_layers - 1:
            h = jnp.tanh(h)                          # last layer -> tanh
        else:
            h = jnp.where(h > 0.0, h, 0.01 * h)      # nn.LeakyReLU default slope
    o_ref[...] = h


@functools.partial(jax.jit, static_argnames=("out_channels",))
def _decoder_apply(x_ncl, Ws, bs, out_channels):
    B = x_ncl.shape[0]
    # NCL (B, Cin, L) -> (B, Cin*L) is a free contiguous reshape; the first
    # dense operator is built to consume exactly this column order.
    x_flat = x_ncl.reshape(B, -1).astype(jnp.float32)
    f_out = Ws[-1].shape[1]
    l_out = f_out // out_channels

    args = [x_flat]
    for w, b in zip(Ws, bs):
        args.extend([w, b])

    out_flat = pl.pallas_call(
        _decoder_fused_kernel,
        out_shape=jax.ShapeDtypeStruct((B, f_out), jnp.float32),
    )(*args)
    # Last operator emits columns in NCL order (co * L_out + o), so this
    # reshape directly yields the PyTorch (B, C_out, L_out) layout for free.
    return out_flat.reshape(B, out_channels, l_out)


def decoder_forward(x_ncl, maxpool_indices, dense_params):
    # maxpool_indices is reversed but never consumed in the PyTorch forward().
    del maxpool_indices
    return _decoder_apply(x_ncl, tuple(dense_params["Ws"]),
                          tuple(dense_params["bs"]),
                          dense_params["out_channels"])


# ----------------------------------------------------------------------------
# One-time host-side param prep (hoisted out of the forward pass)
# ----------------------------------------------------------------------------
def init_decoder_params(key, latent_dim, output_dim, kernel_size,
                        num_layers, pool_step):
    """Structured per-layer params mirroring Decoder.__init__ shapes.

    Each layer dict holds the PyTorch ConvTranspose1d weight (Cin, Cout, K),
    bias (Cout,), stride and padding.
    """
    if pool_step == 8:
        mpc = 1
    elif pool_step == 4:
        mpc = 2
    elif pool_step == 2:
        mpc = 3
    else:
        raise ValueError("pool_step must be 2, 4 or 8")

    layers = []
    i = -1
    for i in range(num_layers - mpc):
        cin = latent_dim * 2 ** i
        cout = latent_dim * 2 ** (i + 1)
        key, k1, k2 = jax.random.split(key, 3)
        w = jax.random.normal(k1, (cin, cout, kernel_size), jnp.float32) * 0.1
        b = jax.random.normal(k2, (cout,), jnp.float32) * 0.1
        layers.append(dict(w=w, b=b, stride=1, pad=kernel_size // 2))
    last_i = i + 1
    for _ in range(mpc - 1):
        cin = latent_dim * 2 ** last_i
        cout = latent_dim * 2 ** (last_i + 1)
        key, k1, k2 = jax.random.split(key, 3)
        w = jax.random.normal(k1, (cin, cout, pool_step), jnp.float32) * 0.1
        b = jax.random.normal(k2, (cout,), jnp.float32) * 0.1
        layers.append(dict(w=w, b=b, stride=pool_step, pad=0))
        last_i += 1
    cin = latent_dim * 2 ** last_i
    key, k1, k2 = jax.random.split(key, 3)
    w = jax.random.normal(k1, (cin, output_dim, pool_step), jnp.float32) * 0.1
    b = jax.random.normal(k2, (output_dim,), jnp.float32) * 0.1
    layers.append(dict(w=w, b=b, stride=pool_step, pad=0))
    assert len(layers) == num_layers
    return layers


def _convT_as_dense(w, b, stride, padding, l_in, in_order, out_order):
    """Fold a ConvTranspose1d into a dense operator on the flattened signal.

    y_flat = x_flat @ M + b_big  exactly reproduces
    ConvTranspose1d(x, w, b, stride, padding) for one sample.
      in_order  = "ncl": x_flat column index is  ci * L_in  + i   (NCL flatten)
                  "nlc": x_flat column index is  i  * Cin   + ci  (NLC flatten)
      out_order analogously for the output columns.
    """
    w = np.asarray(w, np.float32)
    b = np.asarray(b, np.float32)
    cin, cout, k = w.shape
    l_out = (l_in - 1) * stride + k - 2 * padding

    ci = np.arange(cin)
    co = np.arange(cout)

    def in_idx(i):
        return ci * l_in + i if in_order == "ncl" else i * cin + ci

    def out_idx(o):
        return co * l_out + o if out_order == "ncl" else o * cout + co

    m = np.zeros((l_in * cin, l_out * cout), np.float32)
    for i in range(l_in):
        for kk in range(k):
            o = i * stride + kk - padding
            if 0 <= o < l_out:
                m[np.ix_(in_idx(i), out_idx(o))] += w[:, :, kk]

    b_big = np.zeros((l_out * cout,), np.float32)
    for o in range(l_out):
        b_big[out_idx(o)] = b
    return m, b_big, l_out


def build_dense_decoder(layers, input_length, output_dim):
    """Precompute (once) the dense per-layer operators consumed by the kernel."""
    ws, bs = [], []
    l_cur = input_length
    n = len(layers)
    for idx, lyr in enumerate(layers):
        in_order = "ncl" if idx == 0 else "nlc"       # first layer eats NCL flatten
        out_order = "ncl" if idx == n - 1 else "nlc"  # last layer emits NCL flatten
        m, b_big, l_cur = _convT_as_dense(lyr["w"], lyr["b"], lyr["stride"],
                                          lyr["pad"], l_cur, in_order, out_order)
        ws.append(jnp.asarray(m))
        bs.append(jnp.asarray(b_big.reshape(1, -1)))
    return dict(Ws=ws, bs=bs, out_channels=output_dim, L_out=l_cur)


# ----------------------------------------------------------------------------
# Pure-JAX reference (direct transposed-conv definition) for validation
# ----------------------------------------------------------------------------
def _conv_transpose1d_ref(x, w, b, stride, padding):
    # x: (B, Cin, L), w: (Cin, Cout, K) -- PyTorch ConvTranspose1d semantics
    B, Cin, L = x.shape
    _, Cout, K = w.shape
    l_full = (L - 1) * stride + K
    y = jnp.zeros((B, Cout, l_full), jnp.float32)
    for i in range(L):
        contrib = jnp.einsum("bc,cok->bok", x[:, :, i], w)
        y = y.at[:, :, i * stride:i * stride + K].add(contrib)
    l_out = l_full - 2 * padding
    y = y[:, :, padding:padding + l_out]
    return y + b[None, :, None]


def decoder_reference(x_ncl, layers):
    h = x_ncl.astype(jnp.float32)
    n = len(layers)
    for idx, lyr in enumerate(layers):
        h = _conv_transpose1d_ref(h, lyr["w"], lyr["b"], lyr["stride"], lyr["pad"])
        h = jnp.tanh(h) if idx == n - 1 else jnp.where(h > 0, h, 0.01 * h)
    return h


# ----------------------------------------------------------------------------
if __name__ == "__main__":
    latent_dim = 4
    output_dim = 3
    kernel_size = 3
    num_layers = 4
    pool_step = 4          # -> maxpool_layer_count = 2
    B, L = 2, 8

    key = jax.random.PRNGKey(0)
    key, kp, kx = jax.random.split(key, 3)
    layers = init_decoder_params(kp, latent_dim, output_dim, kernel_size,
                                 num_layers, pool_step)
    dense = build_dense_decoder(layers, L, output_dim)   # one-time param prep

    x = jax.random.normal(kx, (B, latent_dim, L), jnp.float32)
    # Unused by forward(); kept to mirror the PyTorch call signature.
    maxpool_indices = [jnp.zeros((B, latent_dim, L), jnp.int32)]

    out = decoder_forward(x, maxpool_indices, dense)
    out = jax.block_until_ready(out)

    expected_shape = (B, output_dim, L * pool_step * pool_step)
    assert out.shape == expected_shape, (out.shape, expected_shape)

    ref = decoder_reference(x, layers)
    np.testing.assert_allclose(np.asarray(out), np.asarray(ref),
                               rtol=1e-4, atol=1e-4)
    print("KERNEL_OK")
</pallas_src>

<mosaic_0001>
module attributes {stable_mosaic.version = 11 : i64} {
  func.func @_decoder_fused_kernel(%arg0: memref<2x32xf32, #tpu.memory_space<vmem>>, %arg1: memref<32x64xf32, #tpu.memory_space<vmem>>, %arg2: memref<1x64xf32, #tpu.memory_space<vmem>>, %arg3: memref<64x128xf32, #tpu.memory_space<vmem>>, %arg4: memref<1x128xf32, #tpu.memory_space<vmem>>, %arg5: memref<128x1024xf32, #tpu.memory_space<vmem>>, %arg6: memref<1x1024xf32, #tpu.memory_space<vmem>>, %arg7: memref<1024x384xf32, #tpu.memory_space<vmem>>, %arg8: memref<1x384xf32, #tpu.memory_space<vmem>>, %arg9: memref<2x384xf32, #tpu.memory_space<vmem>>) attributes {dimension_semantics = [], scalar_prefetch = 0 : i64, scratch_operands = 0 : i64, tpu.core_type = #tpu.core_type<tc>} {
    %c0 = arith.constant 0 : index
    %c0_0 = arith.constant 0 : index
    %0 = vector.load %arg0[%c0, %c0_0] : memref<2x32xf32, #tpu.memory_space<vmem>>, vector<2x32xf32>
    %c0_1 = arith.constant 0 : index
    %c0_2 = arith.constant 0 : index
    %1 = vector.load %arg1[%c0_1, %c0_2] : memref<32x64xf32, #tpu.memory_space<vmem>>, vector<32x64xf32>
    %c0_3 = arith.constant 0 : index
    %c0_4 = arith.constant 0 : index
    %2 = vector.load %arg2[%c0_3, %c0_4] : memref<1x64xf32, #tpu.memory_space<vmem>>, vector<1x64xf32>
    %cst = arith.constant dense<0.000000e+00> : vector<2x64xf32>
    %3 = tpu.matmul %0, %1, %cst {dimension_numbers = #tpu.dot_dimension_numbers<[1], [0], [0], [1], [0, 0, 1, 1], [], []>} : vector<2x32xf32>, vector<32x64xf32>, vector<2x64xf32> -> vector<2x64xf32>
    %4 = vector.broadcast %2 : vector<1x64xf32> to vector<2x64xf32>
    %5 = arith.addf %3, %4 : vector<2x64xf32>
    %cst_5 = arith.constant 0.000000e+00 : f32
    %6 = vector.broadcast %cst_5 : f32 to vector<2x64xf32>
    %7 = arith.cmpf ogt, %5, %6 : vector<2x64xf32>
    %cst_6 = arith.constant 0.00999999977 : f32
    %8 = vector.broadcast %cst_6 : f32 to vector<2x64xf32>
    %9 = arith.mulf %8, %5 : vector<2x64xf32>
    %10 = arith.select %7, %5, %9 : vector<2x64xi1>, vector<2x64xf32>
    %c0_7 = arith.constant 0 : index
    %c0_8 = arith.constant 0 : index
    %11 = vector.load %arg3[%c0_7, %c0_8] : memref<64x128xf32, #tpu.memory_space<vmem>>, vector<64x128xf32>
    %c0_9 = arith.constant 0 : index
    %c0_10 = arith.constant 0 : index
    %12 = vector.load %arg4[%c0_9, %c0_10] : memref<1x128xf32, #tpu.memory_space<vmem>>, vector<1x128xf32>
    %cst_11 = arith.constant dense<0.000000e+00> : vector<2x128xf32>
    %13 = tpu.matmul %10, %11, %cst_11 {dimension_numbers = #tpu.dot_dimension_numbers<[1], [0], [0], [1], [0, 0, 1, 1], [], []>} : vector<2x64xf32>, vector<64x128xf32>, vector<2x128xf32> -> vector<2x128xf32>
    %14 = vector.broadcast %12 : vector<1x128xf32> to vector<2x128xf32>
    %15 = arith.addf %13, %14 : vector<2x128xf32>
    %cst_12 = arith.constant 0.000000e+00 : f32
    %16 = vector.broadcast %cst_12 : f32 to vector<2x128xf32>
    %17 = arith.cmpf ogt, %15, %16 : vector<2x128xf32>
    %cst_13 = arith.constant 0.00999999977 : f32
    %18 = vector.broadcast %cst_13 : f32 to vector<2x128xf32>
    %19 = arith.mulf %18, %15 : vector<2x128xf32>
    %20 = arith.select %17, %15, %19 : vector<2x128xi1>, vector<2x128xf32>
    %c0_14 = arith.constant 0 : index
    %c0_15 = arith.constant 0 : index
    %21 = vector.load %arg5[%c0_14, %c0_15] : memref<128x1024xf32, #tpu.memory_space<vmem>>, vector<128x1024xf32>
    %c0_16 = arith.constant 0 : index
    %c0_17 = arith.constant 0 : index
    %22 = vector.load %arg6[%c0_16, %c0_17] : memref<1x1024xf32, #tpu.memory_space<vmem>>, vector<1x1024xf32>
    %cst_18 = arith.constant dense<0.000000e+00> : vector<2x1024xf32>
    %23 = tpu.matmul %20, %21, %cst_18 {dimension_numbers = #tpu.dot_dimension_numbers<[1], [0], [0], [1], [0, 0, 1, 1], [], []>} : vector<2x128xf32>, vector<128x1024xf32>, vector<2x1024xf32> -> vector<2x1024xf32>
    %24 = vector.broadcast %22 : vector<1x1024xf32> to vector<2x1024xf32>
    %25 = arith.addf %23, %24 : vector<2x1024xf32>
    %cst_19 = arith.constant 0.000000e+00 : f32
    %26 = vector.broadcast %cst_19 : f32 to vector<2x1024xf32>
    %27 = arith.cmpf ogt, %25, %26 : vector<2x1024xf32>
    %cst_20 = arith.constant 0.00999999977 : f32
    %28 = vector.broadcast %cst_20 : f32 to vector<2x1024xf32>
    %29 = arith.mulf %28, %25 : vector<2x1024xf32>
    %30 = arith.select %27, %25, %29 : vector<2x1024xi1>, vector<2x1024xf32>
    %c0_21 = arith.constant 0 : index
    %c0_22 = arith.constant 0 : index
    %31 = vector.load %arg7[%c0_21, %c0_22] : memref<1024x384xf32, #tpu.memory_space<vmem>>, vector<1024x384xf32>
    %c0_23 = arith.constant 0 : index
    %c0_24 = arith.constant 0 : index
    %32 = vector.load %arg8[%c0_23, %c0_24] : memref<1x384xf32, #tpu.memory_space<vmem>>, vector<1x384xf32>
    %cst_25 = arith.constant dense<0.000000e+00> : vector<2x384xf32>
    %33 = tpu.matmul %30, %31, %cst_25 {dimension_numbers = #tpu.dot_dimension_numbers<[1], [0], [0], [1], [0, 0, 1, 1], [], []>} : vector<2x1024xf32>, vector<1024x384xf32>, vector<2x384xf32> -> vector<2x384xf32>
    %34 = vector.broadcast %32 : vector<1x384xf32> to vector<2x384xf32>
    %35 = arith.addf %33, %34 : vector<2x384xf32>
    %36 = math.tanh %35 : vector<2x384xf32>
    %c0_26 = arith.constant 0 : index
    %c0_27 = arith.constant 0 : index
    %37 = vector.load %arg9[%c0_26, %c0_27] : memref<2x384xf32, #tpu.memory_space<vmem>>, vector<2x384xf32>
    tpu.vector_store %arg9[%c0_26, %c0_27], %36 {strides = array<i32>} : memref<2x384xf32, #tpu.memory_space<vmem>>, vector<2x384xf32>,
    return
  }
}

</mosaic_0001>

<llo_original>
// kernel: _decoder_apply.1
$region0: #{_decoder_apply.1}
  #allocation0 [shape = 'u32[]', space=smem, size = 0x4, offset = 0x4, fixed_abs, tag = 'smem constant byte address 0x4 - core index']
  #allocation1 [shape = 'u32[144,128]{1,0:T(1,128)}', space=vmem, size = 0x12000, scoped, tag = 'internal scratch']
  %s0 = inlined_call_operand.vmem [shape: f32[2,32], index: 0, kind: input, shape index: {}]
  %s1 = inlined_call_operand.hbm [shape: f32[32,64], index: 1, kind: input, shape index: {}]
  %s2 = inlined_call_operand.hbm [shape: f32[1,64], index: 2, kind: input, shape index: {}]
  %s3 = inlined_call_operand.hbm [shape: f32[64,128], index: 3, kind: input, shape index: {}]
  %s4 = inlined_call_operand.hbm [shape: f32[1,128], index: 4, kind: input, shape index: {}]
  %s5 = inlined_call_operand.hbm [shape: f32[128,1024], index: 5, kind: input, shape index: {}]
  %s6 = inlined_call_operand.hbm [shape: f32[1,1024], index: 6, kind: input, shape index: {}]
  %s7 = inlined_call_operand.hbm [shape: f32[1024,384], index: 7, kind: input, shape index: {}]
  %s8 = inlined_call_operand.hbm [shape: f32[1,384], index: 8, kind: input, shape index: {}]
  %s9 = inlined_call_operand.hbm [shape: f32[2,384], index: 9, kind: output, shape index: {}]
  %s10 = sld [smem:[#allocation0]]
  $region78: #{_decoder_apply.1} parent=0
    _
  %s12 = ssub.s32 1, %s10
  %s13 = scalar_select 0, %s12, %s10
  $region1: #{_decoder_apply.1} parent=0
    #allocation2 [shape = 'u8[16384]{0}', space=vmem, size = 0x4000, scoped, tag = 'input window, operand 1, single buffered']
    #allocation3 [shape = 's32[1]{0}', space=sflag, size = 0x4, scoped, tag = 'scoped memory for _decoder_apply.1']
    #allocation4 [shape = 's32[1]{0}', space=sflag, size = 0x4, scoped, tag = 'scoped memory for _decoder_apply.1']
    #allocation5 [shape = 'u8[512]{0}', space=vmem, size = 0x400, scoped, tag = 'input window, operand 2, single buffered']
    #allocation6 [shape = 's32[1]{0}', space=sflag, size = 0x4, scoped, tag = 'scoped memory for _decoder_apply.1']
    #allocation7 [shape = 'u8[32768]{0}', space=vmem, size = 0x8000, scoped, tag = 'input window, operand 3, single buffered']
    #allocation8 [shape = 'u8[512]{0}', space=vmem, size = 0x400, scoped, tag = 'input window, operand 4, single buffered']
    #allocation9 [shape = 's32[1]{0}', space=sflag, size = 0x4, scoped, tag = 'scoped memory for _decoder_apply.1']
    #allocation10 [shape = 'u8[524288]{0}', space=vmem, size = 0x80000, scoped, tag = 'input window, operand 5, single buffered']
    #allocation11 [shape = 'u8[4096]{0}', space=vmem, size = 0x1000, scoped, tag = 'input window, operand 6, single buffered']
    #allocation12 [shape = 's32[1]{0}', space=sflag, size = 0x4, scoped, tag = 'scoped memory for _decoder_apply.1']
    #allocation13 [shape = 'u8[1572864]{0}', space=vmem, size = 0x180000, scoped, tag = 'input window, operand 7, single buffered']
    #allocation14 [shape = 'u8[1536]{0}', space=vmem, size = 0x800, scoped, tag = 'input window, operand 8, single buffered']
    #allocation15 [shape = 's32[1]{0}', space=sflag, size = 0x4, scoped, tag = 'scoped memory for _decoder_apply.1']
    #allocation16 [shape = 'u8[3072]{0}', space=vmem, size = 0xc00, scoped, tag = 'output window, operand 0, single buffered']
    %14 = vsyncpa [#allocation3], 0
    %15 = vsyncpa [#allocation6], 0
    %16 = vsyncpa [#allocation9], 0
    %17 = vsyncpa [#allocation12], 0
    %18 = vsyncpa [#allocation15], 0
    %19 = vsyncpa [#allocation4], 0
    // Predicated region
    $region2: #{_decoder_apply.1} parent=1 // pred_check
      _
    $region3: #{_decoder_apply.1} parent=1 // pred_check_branch
      %21 = sbr.rel (0) target = $region5
    $region4: #{_decoder_apply.1} parent=1 // pred_region
      _
    $region5: #{_decoder_apply.1} parent=1 // pred_fallthru
      _
    // Predicated region
    $region6: #{_decoder_apply.1} parent=1 // pred_check
      _
    $region7: #{_decoder_apply.1} parent=1 // pred_check_branch
      %23 = sbr.rel (0) target = $region9
    $region8: #{_decoder_apply.1} parent=1 // pred_region
      %s25 = ssub.s32 512, 512
      %26 = vsyncadd [#allocation3], %s25
      %s27 = sshll.u32 [#allocation2], 4
      %s28 = int_to_ptr.vmem [resolvable:$true] %s27
      %33 = dma.hbm_to_vmem [thread:$0]  %s1, 512, %s28, [#allocation3], 128, 128, 8
    $region9: #{_decoder_apply.1} parent=1 // pred_fallthru
      _
    // Predicated region
    $region10: #{_decoder_apply.1} parent=1 // pred_check
      _
    $region11: #{_decoder_apply.1} parent=1 // pred_check_branch
      %35 = sbr.rel (0) target = $region13
    $region12: #{_decoder_apply.1} parent=1 // pred_region
      %s37 = ssub.s32 16, 16
      %38 = vsyncadd [#allocation6], %s37
      %s40 = sshll.u32 [#allocation5], 4
      %s41 = int_to_ptr.vmem [resolvable:$true] %s40
      %43 = dma.hbm_to_vmem [thread:$0]  %s2, 16, %s41, [#allocation6]
    $region13: #{_decoder_apply.1} parent=1 // pred_fallthru
      _
    // Predicated region
    $region14: #{_decoder_apply.1} parent=1 // pred_check
      _
    $region15: #{_decoder_apply.1} parent=1 // pred_check_branch
      %45 = sbr.rel (0) target = $region17
    $region16: #{_decoder_apply.1} parent=1 // pred_region
      %s47 = ssub.s32 1024, 1024
      %48 = vsyncadd [#allocation6], %s47
      %s49 = sshll.u32 [#allocation7], 4
      %s50 = int_to_ptr.vmem [resolvable:$true] %s49
      %55 = dma.hbm_to_vmem [thread:$0]  %s3, 1024, %s50, [#allocation6], 128, 128, 8
    $region17: #{_decoder_apply.1} parent=1 // pred_fallthru
      _
    // Predicated region
    $region18: #{_decoder_apply.1} parent=1 // pred_check
      _
    $region19: #{_decoder_apply.1} parent=1 // pred_check_branch
      %57 = sbr.rel (0) target = $region21
    $region20: #{_decoder_apply.1} parent=1 // pred_region
      %s59 = ssub.s32 16, 16
      %60 = vsyncadd [#allocation9], %s59
      %s62 = sshll.u32 [#allocation8], 4
      %s63 = int_to_ptr.vmem [resolvable:$true] %s62
      %65 = dma.hbm_to_vmem [thread:$0]  %s4, 16, %s63, [#allocation9]
    $region21: #{_decoder_apply.1} parent=1 // pred_fallthru
      _
    // Predicated region
    $region22: #{_decoder_apply.1} parent=1 // pred_check
      _
    $region23: #{_decoder_apply.1} parent=1 // pred_check_branch
      %67 = sbr.rel (0) target = $region25
    $region24: #{_decoder_apply.1} parent=1 // pred_region
      %s69 = ssub.s32 16384, 16384
      %70 = vsyncadd [#allocation9], %s69
      %s71 = sshll.u32 [#allocation10], 4
      %s72 = int_to_ptr.vmem [resolvable:$true] %s71
      %77 = dma.hbm_to_vmem [thread:$0]  %s5, 16384, %s72, [#allocation9], 1024, 1024, 64
    $region25: #{_decoder_apply.1} parent=1 // pred_fallthru
      _
    // Predicated region
    $region26: #{_decoder_apply.1} parent=1 // pred_check
      _
    $region27: #{_decoder_apply.1} parent=1 // pred_check_branch
      %79 = sbr.rel (0) target = $region29
    $region28: #{_decoder_apply.1} parent=1 // pred_region
      %s81 = ssub.s32 128, 128
      %82 = vsyncadd [#allocation12], %s81
      %s84 = sshll.u32 [#allocation11], 4
      %s85 = int_to_ptr.vmem [resolvable:$true] %s84
      %87 = dma.hbm_to_vmem [thread:$0]  %s6, 128, %s85, [#allocation12]
    $region29: #{_decoder_apply.1} parent=1 // pred_fallthru
      _
    // Predicated region
    $region30: #{_decoder_apply.1} parent=1 // pred_check
      _
    $region31: #{_decoder_apply.1} parent=1 // pred_check_branch
      %89 = sbr.rel (0) target = $region33
    $region32: #{_decoder_apply.1} parent=1 // pred_region
      %s91 = ssub.s32 49152, 49152
      %92 = vsyncadd [#allocation12], %s91
      %s93 = sshll.u32 [#allocation13], 4
      %s94 = int_to_ptr.vmem [resolvable:$true] %s93
      %99 = dma.hbm_to_vmem [thread:$0]  %s7, 49152, %s94, [#allocation12], 384, 384, 24
    $region33: #{_decoder_apply.1} parent=1 // pred_fallthru
      _
    // Predicated region
    $region34: #{_decoder_apply.1} parent=1 // pred_check
      _
    $region35: #{_decoder_apply.1} parent=1 // pred_check_branch
      %101 = sbr.rel (0) target = $region37
    $region36: #{_decoder_apply.1} parent=1 // pred_region
      %s103 = ssub.s32 48, 48
      %104 = vsyncadd [#allocation15], %s103
      %s106 = sshll.u32 [#allocation14], 4
      %s107 = int_to_ptr.vmem [resolvable:$true] %s106
      %109 = dma.hbm_to_vmem [thread:$0]  %s8, 48, %s107, [#allocation15]
    $region37: #{_decoder_apply.1} parent=1 // pred_fallthru
      _
    // Predicated region
    $region38: #{_decoder_apply.1} parent=1 // pred_check
      _
    $region39: #{_decoder_apply.1} parent=1 // pred_check_branch
      %111 = sbr.rel (0) target = $region41
    $region40: #{_decoder_apply.1} parent=1 // pred_region
      %112 = dma.done [#allocation3], 512
    $region41: #{_decoder_apply.1} parent=1 // pred_fallthru
      _
    // Predicated region
    $region42: #{_decoder_apply.1} parent=1 // pred_check
      _
    $region43: #{_decoder_apply.1} parent=1 // pred_check_branch
      %114 = sbr.rel (0) target = $region45
    $region44: #{_decoder_apply.1} parent=1 // pred_region
      %115 = dma.done [#allocation6], 16
    $region45: #{_decoder_apply.1} parent=1 // pred_fallthru
      _
    // Predicated region
    $region46: #{_decoder_apply.1} parent=1 // pred_check
      _
    $region47: #{_decoder_apply.1} parent=1 // pred_check_branch
      %117 = sbr.rel (0) target = $region49
    $region48: #{_decoder_apply.1} parent=1 // pred_region
      %118 = dma.done [#allocation6], 1024
    $region49: #{_decoder_apply.1} parent=1 // pred_fallthru
      _
    // Predicated region
    $region50: #{_decoder_apply.1} parent=1 // pred_check
      _
    $region51: #{_decoder_apply.1} parent=1 // pred_check_branch
      %120 = sbr.rel (0) target = $region53
    $region52: #{_decoder_apply.1} parent=1 // pred_region
      %121 = dma.done [#allocation9], 16
    $region53: #{_decoder_apply.1} parent=1 // pred_fallthru
      _
    // Predicated region
    $region54: #{_decoder_apply.1} parent=1 // pred_check
      _
    $region55: #{_decoder_apply.1} parent=1 // pred_check_branch
      %123 = sbr.rel (0) target = $region57
    $region56: #{_decoder_apply.1} parent=1 // pred_region
      %124 = dma.done [#allocation9], 16384
    $region57: #{_decoder_apply.1} parent=1 // pred_fallthru
      _
    // Predicated region
    $region58: #{_decoder_apply.1} parent=1 // pred_check
      _
    $region59: #{_decoder_apply.1} parent=1 // pred_check_branch
      %126 = sbr.rel (0) target = $region61
    $region60: #{_decoder_apply.1} parent=1 // pred_region
      %127 = dma.done [#allocation12], 128
    $region61: #{_decoder_apply.1} parent=1 // pred_fallthru
      _
    // Predicated region
    $region62: #{_decoder_apply.1} parent=1 // pred_check
      _
    $region63: #{_decoder_apply.1} parent=1 // pred_check_branch
      %129 = sbr.rel (0) target = $region65
    $region64: #{_decoder_apply.1} parent=1 // pred_region
      %130 = dma.done [#allocation12], 49152
    $region65: #{_decoder_apply.1} parent=1 // pred_fallthru
      _
    // Predicated region
    $region66: #{_decoder_apply.1} parent=1 // pred_check
      _
    $region67: #{_decoder_apply.1} parent=1 // pred_check_branch
      %132 = sbr.rel (0) target = $region69
    $region68: #{_decoder_apply.1} parent=1 // pred_region
      %133 = dma.done [#allocation15], 48
    $region69: #{_decoder_apply.1} parent=1 // pred_fallthru
      _
    %v134 = vld [vmem:[%s0] sm:$0x3]
    %v135 = vld [vmem:[#allocation2] sm:$0xff]
    %v136 = vld [vmem:[#allocation2 + $0x8] sm:$0xff]
    %v137 = vld [vmem:[#allocation2 + $0x10] sm:$0xff]
    %v138 = vld [vmem:[#allocation2 + $0x18] sm:$0xff]
    %v139 = vld [vmem:[#allocation5] sm:$0x1]
    %v141 = vlaneseq
    %v142 = vshrl.u32 %v141, 7
    %v143 = vsub.s32 0, %v142
    %v144 = vrot.slane %v139, %v143
    %vm146 = vcmask 261120
    %v148 = vsel %vm146, %v134, 0
    %150 = vmatprep.subr.mxu0 0.0
    %151 = vmatpush1.msra.mxu0 %v135
    %152 = vmatprep.subr.mxu0 0.0
    %153 = vmatpush1.msra.mxu0 %v136
    %154 = vmatprep.subr.mxu0 0.0
    %155 = vmatpush1.msra.mxu0 %v137
    %156 = vmatprep.subr.mxu0 0.0
    %157 = vmatpush1.msra.mxu0 %v138
    %158 = vmatprep.subr.mxu0 0.0
    %159 = vmatpush1.msra.mxu0 0.0
    %160 = vmatprep.subr.mxu0 0.0
    %161 = vmatpush1.msra.mxu0 0.0
    %162 = vmatprep.subr.mxu0 0.0
    %163 = vmatpush1.msra.mxu0 0.0
    %164 = vmatprep.subr.mxu0 0.0
    %165 = vmatpush1.msra.mxu0 0.0
    %166 = vmatprep.subr.mxu0 0.0
    %167 = vmatpush1.msra.mxu0 0.0
    %168 = vmatprep.subr.mxu0 0.0
    %169 = vmatpush1.msra.mxu0 0.0
    %170 = vmatprep.subr.mxu0 0.0
    %171 = vmatpush1.msra.mxu0 0.0
    %172 = vmatprep.subr.mxu0 0.0
    %173 = vmatpush1.msra.mxu0 0.0
    %174 = vmatprep.subr.mxu0 0.0
    %175 = vmatpush1.msra.mxu0 0.0
    %176 = vmatprep.subr.mxu0 0.0
    %177 = vmatpush1.msra.mxu0 0.0
    %178 = vmatprep.subr.mxu0 0.0
    %179 = vmatpush1.msra.mxu0 0.0
    %180 = vmatprep.subr.mxu0 0.0
    %181 = vmatpush1.msra.mxu0 0.0
    %182 = vmatprep.subr.mxu0 0.0
    %183 = vmatpush1.msra.mxu0 0.0
    %184 = vmatprep.subr.mxu0 0.0
    %185 = vmatpush1.msra.mxu0 0.0
    %186 = vmatprep.subr.mxu0 0.0
    %187 = vmatpush1.msra.mxu0 0.0
    %188 = vmatprep.subr.mxu0 0.0
    %189 = vmatpush1.msra.mxu0 0.0
    %190 = vmatprep.subr.mxu0 0.0
    %191 = vmatpush1.msra.mxu0 0.0
    %192 = vmatprep.subr.mxu0 0.0
    %193 = vmatpush1.msra.mxu0 0.0
    %194 = vmatprep.subr.mxu0 0.0
    %195 = vmatpush1.msra.mxu0 0.0
    %196 = vmatprep.subr.mxu0 0.0
    %197 = vmatpush1.msra.mxu0 0.0
    %198 = vmatprep.subr.mxu0 0.0
    %199 = vmatpush1.msra.mxu0 0.0
    %200 = vmatprep.subr.mxu0 0.0
    %201 = vmatpush1.msra.mxu0 0.0
    %202 = vmatprep.subr.mxu0 0.0
    %203 = vmatpush1.msra.mxu0 0.0
    %204 = vmatprep.subr.mxu0 0.0
    %205 = vmatpush1.msra.mxu0 0.0
    %206 = vmatprep.subr.mxu0 0.0
    %207 = vmatpush1.msra.mxu0 0.0
    %208 = vmatprep.subr.mxu0 0.0
    %209 = vmatpush1.msra.mxu0 0.0
    %210 = vmatprep.subr.mxu0 0.0
    %211 = vmatpush1.msra.mxu0 0.0
    %212 = vmatprep.subr.mxu0 0.0
    %213 = vmatpush1.msra.mxu0 0.0
    %214 = vmatprep.mubr.f32.mxu0 0.0
    %215 = vmatmul.mubr.f32.gmra.mrb[0].mxu0 %v148
    %v216 = vpop.f32.mrb[0].mxu0
    %v217 = vadd.f32 %v144, %v216
    %v218 = vpop.f32.mrb[0].mxu0
    %219 = vdwg.mxu0
    %vm220 = vcmp.gt.f32.partialorder %v217, 0.0
    %v221 = vmul.f32 %v217, 0.01
    %v222 = vsel %vm220, %v217, %v221
    %v223 = vld [vmem:[#allocation7] sm:$0xff]
    %v224 = vld [vmem:[#allocation7 + $0x8] sm:$0xff]
    %v225 = vld [vmem:[#allocation7 + $0x10] sm:$0xff]
    %v226 = vld [vmem:[#allocation7 + $0x18] sm:$0xff]
    %v227 = vld [vmem:[#allocation7 + $0x20] sm:$0xff]
    %v228 = vld [vmem:[#allocation7 + $0x28] sm:$0xff]
    %v229 = vld [vmem:[#allocation7 + $0x30] sm:$0xff]
    %v230 = vld [vmem:[#allocation7 + $0x38] sm:$0xff]
    %v231 = vld [vmem:[#allocation8] sm:$0x1]
    %v233 = vlaneseq
    %v234 = vshrl.u32 %v233, 7
    %v235 = vsub.s32 0, %v234
    %v236 = vrot.slane %v231, %v235
    %vm238 = vcmask 523264
    %v240 = vsel %vm238, %v222, 0
    %242 = vmatprep.subr.mxu0 0.0
    %243 = vmatpush1.msra.mxu0 %v223
    %244 = vmatprep.subr.mxu0 0.0
    %245 = vmatpush1.msra.mxu0 %v224
    %246 = vmatprep.subr.mxu0 0.0
    %247 = vmatpush1.msra.mxu0 %v225
    %248 = vmatprep.subr.mxu0 0.0
    %249 = vmatpush1.msra.mxu0 %v226
    %250 = vmatprep.subr.mxu0 0.0
    %251 = vmatpush1.msra.mxu0 %v227
    %252 = vmatprep.subr.mxu0 0.0
    %253 = vmatpush1.msra.mxu0 %v228
    %254 = vmatprep.subr.mxu0 0.0
    %255 = vmatpush1.msra.mxu0 %v229
    %256 = vmatprep.subr.mxu0 0.0
    %257 = vmatpush1.msra.mxu0 %v230
    %258 = vmatprep.subr.mxu0 0.0
    %259 = vmatpush1.msra.mxu0 0.0
    %260 = vmatprep.subr.mxu0 0.0
    %261 = vmatpush1.msra.mxu0 0.0
    %262 = vmatprep.subr.mxu0 0.0
    %263 = vmatpush1.msra.mxu0 0.0
    %264 = vmatprep.subr.mxu0 0.0
    %265 = vmatpush1.msra.mxu0 0.0
    %266 = vmatprep.subr.mxu0 0.0
    %267 = vmatpush1.msra.mxu0 0.0
    %268 = vmatprep.subr.mxu0 0.0
    %269 = vmatpush1.msra.mxu0 0.0
    %270 = vmatprep.subr.mxu0 0.0
    %271 = vmatpush1.msra.mxu0 0.0
    %272 = vmatprep.subr.mxu0 0.0
    %273 = vmatpush1.msra.mxu0 0.0
    %274 = vmatprep.subr.mxu0 0.0
    %275 = vmatpush1.msra.mxu0 0.0
    %276 = vmatprep.subr.mxu0 0.0
    %277 = vmatpush1.msra.mxu0 0.0
    %278 = vmatprep.subr.mxu0 0.0
    %279 = vmatpush1.msra.mxu0 0.0
    %280 = vmatprep.subr.mxu0 0.0
    %281 = vmatpush1.msra.mxu0 0.0
    %282 = vmatprep.subr.mxu0 0.0
    %283 = vmatpush1.msra.mxu0 0.0
    %284 = vmatprep.subr.mxu0 0.0
    %285 = vmatpush1.msra.mxu0 0.0
    %286 = vmatprep.subr.mxu0 0.0
    %287 = vmatpush1.msra.mxu0 0.0
    %288 = vmatprep.subr.mxu0 0.0
    %289 = vmatpush1.msra.mxu0 0.0
    %290 = vmatprep.subr.mxu0 0.0
    %291 = vmatpush1.msra.mxu0 0.0
    %292 = vmatprep.subr.mxu0 0.0
    %293 = vmatpush1.msra.mxu0 0.0
    %294 = vmatprep.subr.mxu0 0.0
    %295 = vmatpush1.msra.mxu0 0.0
    %296 = vmatprep.subr.mxu0 0.0
    %297 = vmatpush1.msra.mxu0 0.0
    %298 = vmatprep.subr.mxu0 0.0
    %299 = vmatpush1.msra.mxu0 0.0
    %300 = vmatprep.subr.mxu0 0.0
    %301 = vmatpush1.msra.mxu0 0.0
    %302 = vmatprep.subr.mxu0 0.0
    %303 = vmatpush1.msra.mxu0 0.0
    %304 = vmatprep.subr.mxu0 0.0
    %305 = vmatpush1.msra.mxu0 0.0
    %306 = vmatprep.mubr.f32.mxu0 0.0
    %307 = vmatmul.mubr.f32.gmra.mrb[0].mxu0 %v240
    %v308 = vpop.f32.mrb[0].mxu0
    %v309 = vadd.f32 %v236, %v308
    %v310 = vpop.f32.mrb[0].mxu0
    %311 = vdwg.mxu0
    %vm312 = vcmp.gt.f32.partialorder %v309, 0.0
    %v313 = vmul.f32 %v309, 0.01
    %v314 = vsel %vm312, %v309, %v313
    %v315 = vld [vmem:[#allocation10] sm:$0xff]
    %v316 = vld [vmem:[#allocation10 + $0x8] sm:$0xff]
    %v317 = vld [vmem:[#allocation10 + $0x10] sm:$0xff]
    %v318 = vld [vmem:[#allocation10 + $0x18] sm:$0xff]
    %v319 = vld [vmem:[#allocation10 + $0x20] sm:$0xff]
    %v320 = vld [vmem:[#allocation10 + $0x28] sm:$0xff]
    %v321 = vld [vmem:[#allocation10 + $0x30] sm:$0xff]
    %v322 = vld [vmem:[#allocation10 + $0x38] sm:$0xff]
    %v323 = vld [vmem:[#allocation10 + $0x40] sm:$0xff]
    %v324 = vld [vmem:[#allocation10 + $0x48] sm:$0xff]
    %v325 = vld [vmem:[#allocation10 + $0x50] sm:$0xff]
    %v326 = vld [vmem:[#allocation10 + $0x58] sm:$0xff]
    %v327 = vld [vmem:[#allocation10 + $0x60] sm:$0xff]
    %v328 = vld [vmem:[#allocation10 + $0x68] sm:$0xff]
    %v329 = vld [vmem:[#allocation10 + $0x70] sm:$0xff]
    %v330 = vld [vmem:[#allocation10 + $0x78] sm:$0xff]
    %v331 = vld [vmem:[#allocation10 + $0x80] sm:$0xff]
    %v332 = vld [vmem:[#allocation10 + $0x88] sm:$0xff]
    %v333 = vld [vmem:[#allocation10 + $0x90] sm:$0xff]
    %v334 = vld [vmem:[#allocation10 + $0x98] sm:$0xff]
    %v335 = vld [vmem:[#allocation10 + $0xa0] sm:$0xff]
    %v336 = vld [vmem:[#allocation10 + $0xa8] sm:$0xff]
    %v337 = vld [vmem:[#allocation10 + $0xb0] sm:$0xff]
    %v338 = vld [vmem:[#allocation10 + $0xb8] sm:$0xff]
    %v339 = vld [vmem:[#allocation10 + $0xc0] sm:$0xff]
    %v340 = vld [vmem:[#allocation10 + $0xc8] sm:$0xff]
    %v341 = vld [vmem:[#allocation10 + $0xd0] sm:$0xff]
    %v342 = vld [vmem:[#allocation10 + $0xd8] sm:$0xff]
    %v343 = vld [vmem:[#allocation10 + $0xe0] sm:$0xff]
    %v344 = vld [vmem:[#allocation10 + $0xe8] sm:$0xff]
    %v345 = vld [vmem:[#allocation10 + $0xf0] sm:$0xff]
    %v346 = vld [vmem:[#allocation10 + $0xf8] sm:$0xff]
    %v347 = vld [vmem:[#allocation10 + $0x100] sm:$0xff]
    %v348 = vld [vmem:[#allocation10 + $0x108] sm:$0xff]
    %v349 = vld [vmem:[#allocation10 + $0x110] sm:$0xff]
    %v350 = vld [vmem:[#allocation10 + $0x118] sm:$0xff]
    %v351 = vld [vmem:[#allocation10 + $0x120] sm:$0xff]
    %v352 = vld [vmem:[#allocation10 + $0x128] sm:$0xff]
    %v353 = vld [vmem:[#allocation10 + $0x130] sm:$0xff]
    %v354 = vld [vmem:[#allocation10 + $0x138] sm:$0xff]
    %v355 = vld [vmem:[#allocation10 + $0x140] sm:$0xff]
    %v356 = vld [vmem:[#allocation10 + $0x148] sm:$0xff]
    %v357 = vld [vmem:[#allocation10 + $0x150] sm:$0xff]
    %v358 = vld [vmem:[#allocation10 + $0x158] sm:$0xff]
    %v359 = vld [vmem:[#allocation10 + $0x160] sm:$0xff]
    %v360 = vld [vmem:[#allocation10 + $0x168] sm:$0xff]
    %v361 = vld [vmem:[#allocation10 + $0x170] sm:$0xff]
    %v362 = vld [vmem:[#allocation10 + $0x178] sm:$0xff]
    %v363 = vld [vmem:[#allocation10 + $0x180] sm:$0xff]
    %v364 = vld [vmem:[#allocation10 + $0x188] sm:$0xff]
    %v365 = vld [vmem:[#allocation10 + $0x190] sm:$0xff]
    %v366 = vld [vmem:[#allocation10 + $0x198] sm:$0xff]
    %v367 = vld [vmem:[#allocation10 + $0x1a0] sm:$0xff]
    %v368 = vld [vmem:[#allocation10 + $0x1a8] sm:$0xff]
    %v369 = vld [vmem:[#allocation10 + $0x1b0] sm:$0xff]
    %v370 = vld [vmem:[#allocation10 + $0x1b8] sm:$0xff]
    %v371 = vld [vmem:[#allocation10 + $0x1c0] sm:$0xff]
    %v372 = vld [vmem:[#allocation10 + $0x1c8] sm:$0xff]
    %v373 = vld [vmem:[#allocation10 + $0x1d0] sm:$0xff]
    %v374 = vld [vmem:[#allocation10 + $0x1d8] sm:$0xff]
    %v375 = vld [vmem:[#allocation10 + $0x1e0] sm:$0xff]
    %v376 = vld [vmem:[#allocation10 + $0x1e8] sm:$0xff]
    %v377 = vld [vmem:[#allocation10 + $0x1f0] sm:$0xff]
    %v378 = vld [vmem:[#allocation10 + $0x1f8] sm:$0xff]
    %v379 = vld [vmem:[#allocation10 + $0x200] sm:$0xff]
    %v380 = vld [vmem:[#allocation10 + $0x208] sm:$0xff]
    %v381 = vld [vmem:[#allocation10 + $0x210] sm:$0xff]
    %v382 = vld [vmem:[#allocation10 + $0x218] sm:$0xff]
    %v383 = vld [vmem:[#allocation10 + $0x220] sm:$0xff]
    %v384 = vld [vmem:[#allocation10 + $0x228] sm:$0xff]
    %v385 = vld [vmem:[#allocation10 + $0x230] sm:$0xff]
    %v386 = vld [vmem:[#allocation10 + $0x238] sm:$0xff]
    %v387 = vld [vmem:[#allocation10 + $0x240] sm:$0xff]
    %v388 = vld [vmem:[#allocation10 + $0x248] sm:$0xff]
    %v389 = vld [vmem:[#allocation10 + $0x250] sm:$0xff]
    %v390 = vld [vmem:[#allocation10 + $0x258] sm:$0xff]
    %v391 = vld [vmem:[#allocation10 + $0x260] sm:$0xff]
    %v392 = vld [vmem:[#allocation10 + $0x268] sm:$0xff]
    %v393 = vld [vmem:[#allocation10 + $0x270] sm:$0xff]
    %v394 = vld [vmem:[#allocation10 + $0x278] sm:$0xff]
    %v395 = vld [vmem:[#allocation10 + $0x280] sm:$0xff]
    %v396 = vld [vmem:[#allocation10 + $0x288] sm:$0xff]
    %v397 = vld [vmem:[#allocation10 + $0x290] sm:$0xff]
    %v398 = vld [vmem:[#allocation10 + $0x298] sm:$0xff]
    %v399 = vld [vmem:[#allocation10 + $0x2a0] sm:$0xff]
    %v400 = vld [vmem:[#allocation10 + $0x2a8] sm:$0xff]
    %v401 = vld [vmem:[#allocation10 + $0x2b0] sm:$0xff]
    %v402 = vld [vmem:[#allocation10 + $0x2b8] sm:$0xff]
    %v403 = vld [vmem:[#allocation10 + $0x2c0] sm:$0xff]
    %v404 = vld [vmem:[#allocation10 + $0x2c8] sm:$0xff]
    %v405 = vld [vmem:[#allocation10 + $0x2d0] sm:$0xff]
    %v406 = vld [vmem:[#allocation10 + $0x2d8] sm:$0xff]
    %v407 = vld [vmem:[#allocation10 + $0x2e0] sm:$0xff]
    %v408 = vld [vmem:[#allocation10 + $0x2e8] sm:$0xff]
    %v409 = vld [vmem:[#allocation10 + $0x2f0] sm:$0xff]
    %v410 = vld [vmem:[#allocation10 + $0x2f8] sm:$0xff]
    %v411 = vld [vmem:[#allocation10 + $0x300] sm:$0xff]
    %v412 = vld [vmem:[#allocation10 + $0x308] sm:$0xff]
    %v413 = vld [vmem:[#allocation10 + $0x310] sm:$0xff]
    %v414 = vld [vmem:[#allocation10 + $0x318] sm:$0xff]
    %v415 = vld [vmem:[#allocation10 + $0x320] sm:$0xff]
    %v416 = vld [vmem:[#allocation10 + $0x328] sm:$0xff]
    %v417 = vld [vmem:[#allocation10 + $0x330] sm:$0xff]
    %v418 = vld [vmem:[#allocation10 + $0x338] sm:$0xff]
    %v419 = vld [vmem:[#allocation10 + $0x340] sm:$0xff]
    %v420 = vld [vmem:[#allocation10 + $0x348] sm:$0xff]
    %v421 = vld [vmem:[#allocation10 + $0x350] sm:$0xff]
    %v422 = vld [vmem:[#allocation10 + $0x358] sm:$0xff]
    %v423 = vld [vmem:[#allocation10 + $0x360] sm:$0xff]
    %v424 = vld [vmem:[#allocation10 + $0x368] sm:$0xff]
    %v425 = vld [vmem:[#allocation10 + $0x370] sm:$0xff]
    %v426 = vld [vmem:[#allocation10 + $0x378] sm:$0xff]
    %v427 = vld [vmem:[#allocation10 + $0x380] sm:$0xff]
    %v428 = vld [vmem:[#allocation10 + $0x388] sm:$0xff]
    %v429 = vld [vmem:[#allocation10 + $0x390] sm:$0xff]
    %v430 = vld [vmem:[#allocation10 + $0x398] sm:$0xff]
    %v431 = vld [vmem:[#allocation10 + $0x3a0] sm:$0xff]
    %v432 = vld [vmem:[#allocation10 + $0x3a8] sm:$0xff]
    %v433 = vld [vmem:[#allocation10 + $0x3b0] sm:$0xff]
    %v434 = vld [vmem:[#allocation10 + $0x3b8] sm:$0xff]
    %v435 = vld [vmem:[#allocation10 + $0x3c0] sm:$0xff]
    %v436 = vld [vmem:[#allocation10 + $0x3c8] sm:$0xff]
    %v437 = vld [vmem:[#allocation10 + $0x3d0] sm:$0xff]
    %v438 = vld [vmem:[#allocation10 + $0x3d8] sm:$0xff]
    %v439 = vld [vmem:[#allocation10 + $0x3e0] sm:$0xff]
    %v440 = vld [vmem:[#allocation10 + $0x3e8] sm:$0xff]
    %v441 = vld [vmem:[#allocation10 + $0x3f0] sm:$0xff]
    %v442 = vld [vmem:[#allocation10 + $0x3f8] sm:$0xff]
    %v443 = vld [vmem:[#allocation11] sm:$0xff]
    %v445 = vlaneseq
    %v446 = vshrl.u32 %v445, 7
    %v447 = vsub.s32 0, %v446
    %v448 = vrot.slane %v443, %v447
    %v449 = vlaneseq
    %v450 = vshrl.u32 %v449, 7
    %v451 = vsub.s32 1, %v450
    %v452 = vrot.slane %v443, %v451
    %v453 = vlaneseq
    %v454 = vshrl.u32 %v453, 7
    %v455 = vsub.s32 2, %v454
    %v456 = vrot.slane %v443, %v455
    %v457 = vlaneseq
    %v458 = vshrl.u32 %v457, 7
    %v459 = vsub.s32 3, %v458
    %v460 = vrot.slane %v443, %v459
    %v461 = vlaneseq
    %v462 = vshrl.u32 %v461, 7
    %v463 = vsub.s32 4, %v462
    %v464 = vrot.slane %v443, %v463
    %v465 = vlaneseq
    %v466 = vshrl.u32 %v465, 7
    %v467 = vsub.s32 5, %v466
    %v468 = vrot.slane %v443, %v467
    %v469 = vlaneseq
    %v470 = vshrl.u32 %v469, 7
    %v471 = vsub.s32 6, %v470
    %v472 = vrot.slane %v443, %v471
    %v473 = vlaneseq
    %v474 = vshrl.u32 %v473, 7
    %v475 = vsub.s32 7, %v474
    %v476 = vrot.slane %v443, %v475
    %485 = vmatprep.subr.mxu0 %v316
    %486 = vmatpush1.msra.mxu0 %v315
    %487 = vmatprep.subr.mxu0 %v324
    %488 = vmatpush1.msra.mxu0 %v323
    %489 = vmatprep.subr.mxu0 %v332
    %490 = vmatpush1.msra.mxu0 %v331
    %491 = vmatprep.subr.mxu0 %v340
    %492 = vmatpush1.msra.mxu0 %v339
    %493 = vmatprep.subr.mxu0 %v348
    %494 = vmatpush1.msra.mxu0 %v347
    %495 = vmatprep.subr.mxu0 %v356
    %496 = vmatpush1.msra.mxu0 %v355
    %497 = vmatprep.subr.mxu0 %v364
    %498 = vmatpush1.msra.mxu0 %v363
    %499 = vmatprep.subr.mxu0 %v372
    %500 = vmatpush1.msra.mxu0 %v371
    %501 = vmatprep.subr.mxu0 %v380
    %502 = vmatpush1.msra.mxu0 %v379
    %503 = vmatprep.subr.mxu0 %v388
    %504 = vmatpush1.msra.mxu0 %v387
    %505 = vmatprep.subr.mxu0 %v396
    %506 = vmatpush1.msra.mxu0 %v395
    %507 = vmatprep.subr.mxu0 %v404
    %508 = vmatpush1.msra.mxu0 %v403
    %509 = vmatprep.subr.mxu0 %v412
    %510 = vmatpush1.msra.mxu0 %v411
    %511 = vmatprep.subr.mxu0 %v420
    %512 = vmatpush1.msra.mxu0 %v419
    %513 = vmatprep.subr.mxu0 %v428
    %514 = vmatpush1.msra.mxu0 %v427
    %515 = vmatprep.subr.mxu0 %v436
    %516 = vmatpush1.msra.mxu0 %v435
    %517 = vmatprep.subr.mxu0 0.0
    %518 = vmatpush1.msra.mxu0 0.0
    %519 = vmatprep.subr.mxu0 0.0
    %520 = vmatpush1.msra.mxu0 0.0
    %521 = vmatprep.subr.mxu0 0.0
    %522 = vmatpush1.msra.mxu0 0.0
    %523 = vmatprep.subr.mxu0 0.0
    %524 = vmatpush1.msra.mxu0 0.0
    %525 = vmatprep.subr.mxu0 0.0
    %526 = vmatpush1.msra.mxu0 0.0
    %527 = vmatprep.subr.mxu0 0.0
    %528 = vmatpush1.msra.mxu0 0.0
    %529 = vmatprep.subr.mxu0 0.0
    %530 = vmatpush1.msra.mxu0 0.0
    %531 = vmatprep.subr.mxu0 0.0
    %532 = vmatpush1.msra.mxu0 0.0
    %533 = vmatprep.subr.mxu0 0.0
    %534 = vmatpush1.msra.mxu0 0.0
    %535 = vmatprep.subr.mxu0 0.0
    %536 = vmatpush1.msra.mxu0 0.0
    %537 = vmatprep.subr.mxu0 0.0
    %538 = vmatpush1.msra.mxu0 0.0
    %539 = vmatprep.subr.mxu0 0.0
    %540 = vmatpush1.msra.mxu0 0.0
    %541 = vmatprep.subr.mxu0 0.0
    %542 = vmatpush1.msra.mxu0 0.0
    %543 = vmatprep.subr.mxu0 0.0
    %544 = vmatpush1.msra.mxu0 0.0
    %545 = vmatprep.subr.mxu0 0.0
    %546 = vmatpush1.msra.mxu0 0.0
    %547 = vmatprep.subr.mxu0 0.0
    %548 = vmatpush1.msra.mxu0 0.0
    %549 = vmatprep.mubr.f32.mxu0 0.0
    %550 = vmatmul.mubr.f32.gmra.mrb[0].mxu0 %v314
    %v551 = vpop.f32.mrb[0].mxu0
    %v552 = vadd.f32 %v448, %v551
    %v553 = vpop.f32.mrb[0].mxu0
    %v554 = vadd.f32 %v452, %v553
    %555 = vdwg.mxu0
    %556 = vmatprep.subr.mxu0 %v318
    %557 = vmatpush1.msra.mxu0 %v317
    %558 = vmatprep.subr.mxu0 %v326
    %559 = vmatpush1.msra.mxu0 %v325
    %560 = vmatprep.subr.mxu0 %v334
    %561 = vmatpush1.msra.mxu0 %v333
    %562 = vmatprep.subr.mxu0 %v342
    %563 = vmatpush1.msra.mxu0 %v341
    %564 = vmatprep.subr.mxu0 %v350
    %565 = vmatpush1.msra.mxu0 %v349
    %566 = vmatprep.subr.mxu0 %v358
    %567 = vmatpush1.msra.mxu0 %v357
    %568 = vmatprep.subr.mxu0 %v366
    %569 = vmatpush1.msra.mxu0 %v365
    %570 = vmatprep.subr.mxu0 %v374
    %571 = vmatpush1.msra.mxu0 %v373
    %572 = vmatprep.subr.mxu0 %v382
    %573 = vmatpush1.msra.mxu0 %v381
    %574 = vmatprep.subr.mxu0 %v390
    %575 = vmatpush1.msra.mxu0 %v389
    %576 = vmatprep.subr.mxu0 %v398
    %577 = vmatpush1.msra.mxu0 %v397
    %578 = vmatprep.subr.mxu0 %v406
    %579 = vmatpush1.msra.mxu0 %v405
    %580 = vmatprep.subr.mxu0 %v414
    %581 = vmatpush1.msra.mxu0 %v413
    %582 = vmatprep.subr.mxu0 %v422
    %583 = vmatpush1.msra.mxu0 %v421
    %584 = vmatprep.subr.mxu0 %v430
    %585 = vmatpush1.msra.mxu0 %v429
    %586 = vmatprep.subr.mxu0 %v438
    %587 = vmatpush1.msra.mxu0 %v437
    %588 = vmatprep.subr.mxu0 0.0
    %589 = vmatpush1.msra.mxu0 0.0
    %590 = vmatprep.subr.mxu0 0.0
    %591 = vmatpush1.msra.mxu0 0.0
    %592 = vmatprep.subr.mxu0 0.0
    %593 = vmatpush1.msra.mxu0 0.0
    %594 = vmatprep.subr.mxu0 0.0
    %595 = vmatpush1.msra.mxu0 0.0
    %596 = vmatprep.subr.mxu0 0.0
    %597 = vmatpush1.msra.mxu0 0.0
    %598 = vmatprep.subr.mxu0 0.0
    %599 = vmatpush1.msra.mxu0 0.0
    %600 = vmatprep.subr.mxu0 0.0
    %601 = vmatpush1.msra.mxu0 0.0
    %602 = vmatprep.subr.mxu0 0.0
    %603 = vmatpush1.msra.mxu0 0.0
    %604 = vmatprep.subr.mxu0 0.0
    %605 = vmatpush1.msra.mxu0 0.0
    %606 = vmatprep.subr.mxu0 0.0
    %607 = vmatpush1.msra.mxu0 0.0
    %608 = vmatprep.subr.mxu0 0.0
    %609 = vmatpush1.msra.mxu0 0.0
    %610 = vmatprep.subr.mxu0 0.0
    %611 = vmatpush1.msra.mxu0 0.0
    %612 = vmatprep.subr.mxu0 0.0
    %613 = vmatpush1.msra.mxu0 0.0
    %614 = vmatprep.subr.mxu0 0.0
    %615 = vmatpush1.msra.mxu0 0.0
    %616 = vmatprep.subr.mxu0 0.0
    %617 = vmatpush1.msra.mxu0 0.0
    %618 = vmatprep.subr.mxu0 0.0
    %619 = vmatpush1.msra.mxu0 0.0
    %620 = vmatprep.mubr.f32.mxu0 0.0
    %621 = vmatmul.mubr.f32.gmra.mrb[0].mxu0 %v314
    %v622 = vpop.f32.mrb[0].mxu0
    %v623 = vadd.f32 %v456, %v622
    %v624 = vpop.f32.mrb[0].mxu0
    %v625 = vadd.f32 %v460, %v624
    %626 = vdwg.mxu0
    %627 = vmatprep.subr.mxu0 %v320
    %628 = vmatpush1.msra.mxu0 %v319
    %629 = vmatprep.subr.mxu0 %v328
    %630 = vmatpush1.msra.mxu0 %v327
    %631 = vmatprep.subr.mxu0 %v336
    %632 = vmatpush1.msra.mxu0 %v335
    %633 = vmatprep.subr.mxu0 %v344
    %634 = vmatpush1.msra.mxu0 %v343
    %635 = vmatprep.subr.mxu0 %v352
    %636 = vmatpush1.msra.mxu0 %v351
    %637 = vmatprep.subr.mxu0 %v360
    %638 = vmatpush1.msra.mxu0 %v359
    %639 = vmatprep.subr.mxu0 %v368
    %640 = vmatpush1.msra.mxu0 %v367
    %641 = vmatprep.subr.mxu0 %v376
    %642 = vmatpush1.msra.mxu0 %v375
    %643 = vmatprep.subr.mxu0 %v384
    %644 = vmatpush1.msra.mxu0 %v383
    %645 = vmatprep.subr.mxu0 %v392
    %646 = vmatpush1.msra.mxu0 %v391
    %647 = vmatprep.subr.mxu0 %v400
    %648 = vmatpush1.msra.mxu0 %v399
    %649 = vmatprep.subr.mxu0 %v408
    %650 = vmatpush1.msra.mxu0 %v407
    %651 = vmatprep.subr.mxu0 %v416
    %652 = vmatpush1.msra.mxu0 %v415
    %653 = vmatprep.subr.mxu0 %v424
    %654 = vmatpush1.msra.mxu0 %v423
    %655 = vmatprep.subr.mxu0 %v432
    %656 = vmatpush1.msra.mxu0 %v431
    %657 = vmatprep.subr.mxu0 %v440
    %658 = vmatpush1.msra.mxu0 %v439
    %659 = vmatprep.subr.mxu0 0.0
    %660 = vmatpush1.msra.mxu0 0.0
    %661 = vmatprep.subr.mxu0 0.0
    %662 = vmatpush1.msra.mxu0 0.0
    %663 = vmatprep.subr.mxu0 0.0
    %664 = vmatpush1.msra.mxu0 0.0
    %665 = vmatprep.subr.mxu0 0.0
    %666 = vmatpush1.msra.mxu0 0.0
    %667 = vmatprep.subr.mxu0 0.0
    %668 = vmatpush1.msra.mxu0 0.0
    %669 = vmatprep.subr.mxu0 0.0
    %670 = vmatpush1.msra.mxu0 0.0
    %671 = vmatprep.subr.mxu0 0.0
    %672 = vmatpush1.msra.mxu0 0.0
    %673 = vmatprep.subr.mxu0 0.0
    %674 = vmatpush1.msra.mxu0 0.0
    %675 = vmatprep.subr.mxu0 0.0
    %676 = vmatpush1.msra.mxu0 0.0
    %677 = vmatprep.subr.mxu0 0.0
    %678 = vmatpush1.msra.mxu0 0.0
    %679 = vmatprep.subr.mxu0 0.0
    %680 = vmatpush1.msra.mxu0 0.0
    %681 = vmatprep.subr.mxu0 0.0
    %682 = vmatpush1.msra.mxu0 0.0
    %683 = vmatprep.subr.mxu0 0.0
    %684 = vmatpush1.msra.mxu0 0.0
    %685 = vmatprep.subr.mxu0 0.0
    %686 = vmatpush1.msra.mxu0 0.0
    %687 = vmatprep.subr.mxu0 0.0
    %688 = vmatpush1.msra.mxu0 0.0
    %689 = vmatprep.subr.mxu0 0.0
    %690 = vmatpush1.msra.mxu0 0.0
    %691 = vmatprep.mubr.f32.mxu0 0.0
    %692 = vmatmul.mubr.f32.gmra.mrb[0].mxu0 %v314
    %v693 = vpop.f32.mrb[0].mxu0
    %v694 = vadd.f32 %v464, %v693
    %v695 = vpop.f32.mrb[0].mxu0
    %v696 = vadd.f32 %v468, %v695
    %697 = vdwg.mxu0
    %698 = vmatprep.subr.mxu0 %v322
    %699 = vmatpush1.msra.mxu0 %v321
    %700 = vmatprep.subr.mxu0 %v330
    %701 = vmatpush1.msra.mxu0 %v329
    %702 = vmatprep.subr.mxu0 %v338
    %703 = vmatpush1.msra.mxu0 %v337
    %704 = vmatprep.subr.mxu0 %v346
    %705 = vmatpush1.msra.mxu0 %v345
    %706 = vmatprep.subr.mxu0 %v354
    %707 = vmatpush1.msra.mxu0 %v353
    %708 = vmatprep.subr.mxu0 %v362
    %709 = vmatpush1.msra.mxu0 %v361
    %710 = vmatprep.subr.mxu0 %v370
    %711 = vmatpush1.msra.mxu0 %v369
    %712 = vmatprep.subr.mxu0 %v378
    %713 = vmatpush1.msra.mxu0 %v377
    %714 = vmatprep.subr.mxu0 %v386
    %715 = vmatpush1.msra.mxu0 %v385
    %716 = vmatprep.subr.mxu0 %v394
    %717 = vmatpush1.msra.mxu0 %v393
    %718 = vmatprep.subr.mxu0 %v402
    %719 = vmatpush1.msra.mxu0 %v401
    %720 = vmatprep.subr.mxu0 %v410
    %721 = vmatpush1.msra.mxu0 %v409
    %722 = vmatprep.subr.mxu0 %v418
    %723 = vmatpush1.msra.mxu0 %v417
    %724 = vmatprep.subr.mxu0 %v426
    %725 = vmatpush1.msra.mxu0 %v425
    %726 = vmatprep.subr.mxu0 %v434
    %727 = vmatpush1.msra.mxu0 %v433
    %728 = vmatprep.subr.mxu0 %v442
    %729 = vmatpush1.msra.mxu0 %v441
    %730 = vmatprep.subr.mxu0 0.0
    %731 = vmatpush1.msra.mxu0 0.0
    %732 = vmatprep.subr.mxu0 0.0
    %733 = vmatpush1.msra.mxu0 0.0
    %734 = vmatprep.subr.mxu0 0.0
    %735 = vmatpush1.msra.mxu0 0.0
    %736 = vmatprep.subr.mxu0 0.0
    %737 = vmatpush1.msra.mxu0 0.0
    %738 = vmatprep.subr.mxu0 0.0
    %739 = vmatpush1.msra.mxu0 0.0
    %740 = vmatprep.subr.mxu0 0.0
    %741 = vmatpush1.msra.mxu0 0.0
    %742 = vmatprep.subr.mxu0 0.0
    %743 = vmatpush1.msra.mxu0 0.0
    %744 = vmatprep.subr.mxu0 0.0
    %745 = vmatpush1.msra.mxu0 0.0
    %746 = vmatprep.subr.mxu0 0.0
    %747 = vmatpush1.msra.mxu0 0.0
    %748 = vmatprep.subr.mxu0 0.0
    %749 = vmatpush1.msra.mxu0 0.0
    %750 = vmatprep.subr.mxu0 0.0
    %751 = vmatpush1.msra.mxu0 0.0
    %752 = vmatprep.subr.mxu0 0.0
    %753 = vmatpush1.msra.mxu0 0.0
    %754 = vmatprep.subr.mxu0 0.0
    %755 = vmatpush1.msra.mxu0 0.0
    %756 = vmatprep.subr.mxu0 0.0
    %757 = vmatpush1.msra.mxu0 0.0
    %758 = vmatprep.subr.mxu0 0.0
    %759 = vmatpush1.msra.mxu0 0.0
    %760 = vmatprep.subr.mxu0 0.0
    %761 = vmatpush1.msra.mxu0 0.0
    %762 = vmatprep.mubr.f32.mxu0 0.0
    %763 = vmatmul.mubr.f32.gmra.mrb[0].mxu0 %v314
    %v764 = vpop.f32.mrb[0].mxu0
    %v765 = vadd.f32 %v472, %v764
    %v766 = vpop.f32.mrb[0].mxu0
    %v767 = vadd.f32 %v476, %v766
    %768 = vdwg.mxu0
    %vm769 = vcmp.gt.f32.partialorder %v552, 0.0
    %vm770 = vcmp.gt.f32.partialorder %v554, 0.0
    %vm771 = vcmp.gt.f32.partialorder %v623, 0.0
    %vm772 = vcmp.gt.f32.partialorder %v625, 0.0
    %vm773 = vcmp.gt.f32.partialorder %v694, 0.0
    %vm774 = vcmp.gt.f32.partialorder %v696, 0.0
    %vm775 = vcmp.gt.f32.partialorder %v765, 0.0
    %vm776 = vcmp.gt.f32.partialorder %v767, 0.0
    %v777 = vmul.f32 %v552, 0.01
    %v778 = vmul.f32 %v554, 0.01
    %v779 = vmul.f32 %v623, 0.01
    %v780 = vmul.f32 %v625, 0.01
    %v781 = vmul.f32 %v694, 0.01
    %v782 = vmul.f32 %v696, 0.01
    %v783 = vmul.f32 %v765, 0.01
    %v784 = vmul.f32 %v767, 0.01
    %v785 = vsel %vm769, %v552, %v777
    %v786 = vsel %vm770, %v554, %v778
    %v787 = vsel %vm771, %v623, %v779
    %v788 = vsel %vm772, %v625, %v780
    %v789 = vsel %vm773, %v694, %v781
    %v790 = vsel %vm774, %v696, %v782
    %v791 = vsel %vm775, %v765, %v783
    %v792 = vsel %vm776, %v767, %v784
    %v793 = vld [vmem:[#allocation13] sm:$0xff]
    %v794 = vld [vmem:[#allocation13 + $0x8] sm:$0xff]
    %v795 = vld [vmem:[#allocation13 + $0x10] sm:$0xff]
    %v796 = vld [vmem:[#allocation13 + $0x18] sm:$0xff]
    %v797 = vld [vmem:[#allocation13 + $0x20] sm:$0xff]
    %v798 = vld [vmem:[#allocation13 + $0x28] sm:$0xff]
    %v799 = vld [vmem:[#allocation13 + $0x30] sm:$0xff]
    %v800 = vld [vmem:[#allocation13 + $0x38] sm:$0xff]
    %v801 = vld [vmem:[#allocation13 + $0x40] sm:$0xff]
    %v802 = vld [vmem:[#allocation13 + $0x48] sm:$0xff]
    %v803 = vld [vmem:[#allocation13 + $0x50] sm:$0xff]
    %v804 = vld [vmem:[#allocation13 + $0x58] sm:$0xff]
    %v805 = vld [vmem:[#allocation13 + $0x60] sm:$0xff]
    %v806 = vld [vmem:[#allocation13 + $0x68] sm:$0xff]
    %v807 = vld [vmem:[#allocation13 + $0x70] sm:$0xff]
    %v808 = vld [vmem:[#allocation13 + $0x78] sm:$0xff]
    %v809 = vld [vmem:[#allocation13 + $0x80] sm:$0xff]
    %v810 = vld [vmem:[#allocation13 + $0x88] sm:$0xff]
    %v811 = vld [vmem:[#allocation13 + $0x90] sm:$0xff]
    %v812 = vld [vmem:[#allocation13 + $0x98] sm:$0xff]
    %v813 = vld [vmem:[#allocation13 + $0xa0] sm:$0xff]
    %v814 = vld [vmem:[#allocation13 + $0xa8] sm:$0xff]
    %v815 = vld [vmem:[#allocation13 + $0xb0] sm:$0xff]
    %v816 = vld [vmem:[#allocation13 + $0xb8] sm:$0xff]
    %v817 = vld [vmem:[#allocation13 + $0xc0] sm:$0xff]
    %v818 = vld [vmem:[#allocation13 + $0xc8] sm:$0xff]
    %v819 = vld [vmem:[#allocation13 + $0xd0] sm:$0xff]
    %v820 = vld [vmem:[#allocation13 + $0xd8] sm:$0xff]
    %v821 = vld [vmem:[#allocation13 + $0xe0] sm:$0xff]
    %v822 = vld [vmem:[#allocation13 + $0xe8] sm:$0xff]
    %v823 = vld [vmem:[#allocation13 + $0xf0] sm:$0xff]
    %v824 = vld [vmem:[#allocation13 + $0xf8] sm:$0xff]
    %v825 = vld [vmem:[#allocation13 + $0x100] sm:$0xff]
    %v826 = vld [vmem:[#allocation13 + $0x108] sm:$0xff]
    %v827 = vld [vmem:[#allocation13 + $0x110] sm:$0xff]
    %v828 = vld [vmem:[#allocation13 + $0x118] sm:$0xff]
    %v829 = vld [vmem:[#allocation13 + $0x120] sm:$0xff]
    %v830 = vld [vmem:[#allocation13 + $0x128] sm:$0xff]
    %v831 = vld [vmem:[#allocation13 + $0x130] sm:$0xff]
    %v832 = vld [vmem:[#allocation13 + $0x138] sm:$0xff]
    %v833 = vld [vmem:[#allocation13 + $0x140] sm:$0xff]
    %v834 = vld [vmem:[#allocation13 + $0x148] sm:$0xff]
    %v835 = vld [vmem:[#allocation13 + $0x150] sm:$0xff]
    %v836 = vld [vmem:[#allocation13 + $0x158] sm:$0xff]
    %v837 = vld [vmem:[#allocation13 + $0x160] sm:$0xff]
    %v838 = vld [vmem:[#allocation13 + $0x168] sm:$0xff]
    %v839 = vld [vmem:[#allocation13 + $0x170] sm:$0xff]
    %v840 = vld [vmem:[#allocation13 + $0x178] sm:$0xff]
    %v841 = vld [vmem:[#allocation13 + $0x180] sm:$0xff]
    %v842 = vld [vmem:[#allocation13 + $0x188] sm:$0xff]
    %v843 = vld [vmem:[#allocation13 + $0x190] sm:$0xff]
    %v844 = vld [vmem:[#allocation13 + $0x198] sm:$0xff]
    %v845 = vld [vmem:[#allocation13 + $0x1a0] sm:$0xff]
    %v846 = vld [vmem:[#allocation13 + $0x1a8] sm:$0xff]
    %v847 = vld [vmem:[#allocation13 + $0x1b0] sm:$0xff]
    %v848 = vld [vmem:[#allocation13 + $0x1b8] sm:$0xff]
    %v849 = vld [vmem:[#allocation13 + $0x1c0] sm:$0xff]
    %v850 = vld [vmem:[#allocation13 + $0x1c8] sm:$0xff]
    %v851 = vld [vmem:[#allocation13 + $0x1d0] sm:$0xff]
    %v852 = vld [vmem:[#allocation13 + $0x1d8] sm:$0xff]
    %v853 = vld [vmem:[#allocation13 + $0x1e0] sm:$0xff]
    %v854 = vld [vmem:[#allocation13 + $0x1e8] sm:$0xff]
    %v855 = vld [vmem:[#allocation13 + $0x1f0] sm:$0xff]
    %v856 = vld [vmem:[#allocation13 + $0x1f8] sm:$0xff]
    %v857 = vld [vmem:[#allocation13 + $0x200] sm:$0xff]
    %v858 = vld [vmem:[#allocation13 + $0x208] sm:$0xff]
    %v859 = vld [vmem:[#allocation13 + $0x210] sm:$0xff]
    %v860 = vld [vmem:[#allocation13 + $0x218] sm:$0xff]
    %v861 = vld [vmem:[#allocation13 + $0x220] sm:$0xff]
    %v862 = vld [vmem:[#allocation13 + $0x228] sm:$0xff]
    %v863 = vld [vmem:[#allocation13 + $0x230] sm:$0xff]
    %v864 = vld [vmem:[#allocation13 + $0x238] sm:$0xff]
    %v865 = vld [vmem:[#allocation13 + $0x240] sm:$0xff]
    %v866 = vld [vmem:[#allocation13 + $0x248] sm:$0xff]
    %v867 = vld [vmem:[#allocation13 + $0x250] sm:$0xff]
    %v868 = vld [vmem:[#allocation13 + $0x258] sm:$0xff]
    %v869 = vld [vmem:[#allocation13 + $0x260] sm:$0xff]
    %v870 = vld [vmem:[#allocation13 + $0x268] sm:$0xff]
    %v871 = vld [vmem:[#allocation13 + $0x270] sm:$0xff]
    %v872 = vld [vmem:[#allocation13 + $0x278] sm:$0xff]
    %v873 = vld [vmem:[#allocation13 + $0x280] sm:$0xff]
    %v874 = vld [vmem:[#allocation13 + $0x288] sm:$0xff]
    %v875 = vld [vmem:[#allocation13 + $0x290] sm:$0xff]
    %v876 = vld [vmem:[#allocation13 + $0x298] sm:$0xff]
    %v877 = vld [vmem:[#allocation13 + $0x2a0] sm:$0xff]
    %v878 = vld [vmem:[#allocation13 + $0x2a8] sm:$0xff]
    %v879 = vld [vmem:[#allocation13 + $0x2b0] sm:$0xff]
    %v880 = vld [vmem:[#allocation13 + $0x2b8] sm:$0xff]
    %v881 = vld [vmem:[#allocation13 + $0x2c0] sm:$0xff]
    %v882 = vld [vmem:[#allocation13 + $0x2c8] sm:$0xff]
    %v883 = vld [vmem:[#allocation13 + $0x2d0] sm:$0xff]
    %v884 = vld [vmem:[#allocation13 + $0x2d8] sm:$0xff]
    %v885 = vld [vmem:[#allocation13 + $0x2e0] sm:$0xff]
    %v886 = vld [vmem:[#allocation13 + $0x2e8] sm:$0xff]
    %v887 = vld [vmem:[#allocation13 + $0x2f0] sm:$0xff]
    %v888 = vld [vmem:[#allocation13 + $0x2f8] sm:$0xff]
    %v889 = vld [vmem:[#allocation13 + $0x300] sm:$0xff]
    %v890 = vld [vmem:[#allocation13 + $0x308] sm:$0xff]
    %v891 = vld [vmem:[#allocation13 + $0x310] sm:$0xff]
    %v892 = vld [vmem:[#allocation13 + $0x318] sm:$0xff]
    %v893 = vld [vmem:[#allocation13 + $0x320] sm:$0xff]
    %v894 = vld [vmem:[#allocation13 + $0x328] sm:$0xff]
    %v895 = vld [vmem:[#allocation13 + $0x330] sm:$0xff]
    %v896 = vld [vmem:[#allocation13 + $0x338] sm:$0xff]
    %v897 = vld [vmem:[#allocation13 + $0x340] sm:$0xff]
    %v898 = vld [vmem:[#allocation13 + $0x348] sm:$0xff]
    %v899 = vld [vmem:[#allocation13 + $0x350] sm:$0xff]
    %v900 = vld [vmem:[#allocation13 + $0x358] sm:$0xff]
    %v901 = vld [vmem:[#allocation13 + $0x360] sm:$0xff]
    %v902 = vld [vmem:[#allocation13 + $0x368] sm:$0xff]
    %v903 = vld [vmem:[#allocation13 + $0x370] sm:$0xff]
    %v904 = vld [vmem:[#allocation13 + $0x378] sm:$0xff]
    %v905 = vld [vmem:[#allocation13 + $0x380] sm:$0xff]
    %v906 = vld [vmem:[#allocation13 + $0x388] sm:$0xff]
    %v907 = vld [vmem:[#allocation13 + $0x390] sm:$0xff]
    %v908 = vld [vmem:[#allocation13 + $0x398] sm:$0xff]
    %v909 = vld [vmem:[#allocation13 + $0x3a0] sm:$0xff]
    %v910 = vld [vmem:[#allocation13 + $0x3a8] sm:$0xff]
    %v911 = vld [vmem:[#allocation13 + $0x3b0] sm:$0xff]
    %v912 = vld [vmem:[#allocation13 + $0x3b8] sm:$0xff]
    %v913 = vld [vmem:[#allocation13 + $0x3c0] sm:$0xff]
    %v914 = vld [vmem:[#allocation13 + $0x3c8] sm:$0xff]
    %v915 = vld [vmem:[#allocation13 + $0x3d0] sm:$0xff]
    %v916 = vld [vmem:[#allocation13 + $0x3d8] sm:$0xff]
    %v917 = vld [vmem:[#allocation13 + $0x3e0] sm:$0xff]
    %v918 = vld [vmem:[#allocation13 + $0x3e8] sm:$0xff]
    %v919 = vld [vmem:[#allocation13 + $0x3f0] sm:$0xff]
    %v920 = vld [vmem:[#allocation13 + $0x3f8] sm:$0xff]
    %v921 = vld [vmem:[#allocation13 + $0x400] sm:$0xff]
    %v922 = vld [vmem:[#allocation13 + $0x408] sm:$0xff]
    %v923 = vld [vmem:[#allocation13 + $0x410] sm:$0xff]
    %v924 = vld [vmem:[#allocation13 + $0x418] sm:$0xff]
    %v925 = vld [vmem:[#allocation13 + $0x420] sm:$0xff]
    %v926 = vld [vmem:[#allocation13 + $0x428] sm:$0xff]
    %v927 = vld [vmem:[#allocation13 + $0x430] sm:$0xff]
    %v928 = vld [vmem:[#allocation13 + $0x438] sm:$0xff]
    %v929 = vld [vmem:[#allocation13 + $0x440] sm:$0xff]
    %v930 = vld [vmem:[#allocation13 + $0x448] sm:$0xff]
    %v931 = vld [vmem:[#allocation13 + $0x450] sm:$0xff]
    %v932 = vld [vmem:[#allocation13 + $0x458] sm:$0xff]
    %v933 = vld [vmem:[#allocation13 + $0x460] sm:$0xff]
    %v934 = vld [vmem:[#allocation13 + $0x468] sm:$0xff]
    %v935 = vld [vmem:[#allocation13 + $0x470] sm:$0xff]
    %v936 = vld [vmem:[#allocation13 + $0x478] sm:$0xff]
    %v937 = vld [vmem:[#allocation13 + $0x480] sm:$0xff]
    %v938 = vld [vmem:[#allocation13 + $0x488] sm:$0xff]
    %v939 = vld [vmem:[#allocation13 + $0x490] sm:$0xff]
    %v940 = vld [vmem:[#allocation13 + $0x498] sm:$0xff]
    %v941 = vld [vmem:[#allocation13 + $0x4a0] sm:$0xff]
    %v942 = vld [vmem:[#allocation13 + $0x4a8] sm:$0xff]
    %v943 = vld [vmem:[#allocation13 + $0x4b0] sm:$0xff]
    %v944 = vld [vmem:[#allocation13 + $0x4b8] sm:$0xff]
    %v945 = vld [vmem:[#allocation13 + $0x4c0] sm:$0xff]
    %v946 = vld [vmem:[#allocation13 + $0x4c8] sm:$0xff]
    %v947 = vld [vmem:[#allocation13 + $0x4d0] sm:$0xff]
    %v948 = vld [vmem:[#allocation13 + $0x4d8] sm:$0xff]
    %v949 = vld [vmem:[#allocation13 + $0x4e0] sm:$0xff]
    %v950 = vld [vmem:[#allocation13 + $0x4e8] sm:$0xff]
    %v951 = vld [vmem:[#allocation13 + $0x4f0] sm:$0xff]
    %v952 = vld [vmem:[#allocation13 + $0x4f8] sm:$0xff]
    %v953 = vld [vmem:[#allocation13 + $0x500] sm:$0xff]
    %v954 = vld [vmem:[#allocation13 + $0x508] sm:$0xff]
    %v955 = vld [vmem:[#allocation13 + $0x510] sm:$0xff]
    %v956 = vld [vmem:[#allocation13 + $0x518] sm:$0xff]
    %v957 = vld [vmem:[#allocation13 + $0x520] sm:$0xff]
    %v958 = vld [vmem:[#allocation13 + $0x528] sm:$0xff]
    %v959 = vld [vmem:[#allocation13 + $0x530] sm:$0xff]
    %v960 = vld [vmem:[#allocation13 + $0x538] sm:$0xff]
    %v961 = vld [vmem:[#allocation13 + $0x540] sm:$0xff]
    %v962 = vld [vmem:[#allocation13 + $0x548] sm:$0xff]
    %v963 = vld [vmem:[#allocation13 + $0x550] sm:$0xff]
    %v964 = vld [vmem:[#allocation13 + $0x558] sm:$0xff]
    %v965 = vld [vmem:[#allocation13 + $0x560] sm:$0xff]
    %v966 = vld [vmem:[#allocation13 + $0x568] sm:$0xff]
    %v967 = vld [vmem:[#allocation13 + $0x570] sm:$0xff]
    %v968 = vld [vmem:[#allocation13 + $0x578] sm:$0xff]
    %v969 = vld [vmem:[#allocation13 + $0x580] sm:$0xff]
    %v970 = vld [vmem:[#allocation13 + $0x588] sm:$0xff]
    %v971 = vld [vmem:[#allocation13 + $0x590] sm:$0xff]
    %v972 = vld [vmem:[#allocation13 + $0x598] sm:$0xff]
    %v973 = vld [vmem:[#allocation13 + $0x5a0] sm:$0xff]
    %v974 = vld [vmem:[#allocation13 + $0x5a8] sm:$0xff]
    %v975 = vld [vmem:[#allocation13 + $0x5b0] sm:$0xff]
    %v976 = vld [vmem:[#allocation13 + $0x5b8] sm:$0xff]
    %v977 = vld [vmem:[#allocation13 + $0x5c0] sm:$0xff]
    %v978 = vld [vmem:[#allocation13 + $0x5c8] sm:$0xff]
    %v979 = vld [vmem:[#allocation13 + $0x5d0] sm:$0xff]
    %v980 = vld [vmem:[#allocation13 + $0x5d8] sm:$0xff]
    %v981 = vld [vmem:[#allocation13 + $0x5e0] sm:$0xff]
    %v982 = vld [vmem:[#allocation13 + $0x5e8] sm:$0xff]
    %v983 = vld [vmem:[#allocation13 + $0x5f0] sm:$0xff]
    %v984 = vld [vmem:[#allocation13 + $0x5f8] sm:$0xff]
    %v985 = vld [vmem:[#allocation13 + $0x600] sm:$0xff]
    %v986 = vld [vmem:[#allocation13 + $0x608] sm:$0xff]
    %v987 = vld [vmem:[#allocation13 + $0x610] sm:$0xff]
    %v988 = vld [vmem:[#allocation13 + $0x618] sm:$0xff]
    %v989 = vld [vmem:[#allocation13 + $0x620] sm:$0xff]
    %v990 = vld [vmem:[#allocation13 + $0x628] sm:$0xff]
    %v991 = vld [vmem:[#allocation13 + $0x630] sm:$0xff]
    %v992 = vld [vmem:[#allocation13 + $0x638] sm:$0xff]
    %v993 = vld [vmem:[#allocation13 + $0x640] sm:$0xff]
    %v994 = vld [vmem:[#allocation13 + $0x648] sm:$0xff]
    %v995 = vld [vmem:[#allocation13 + $0x650] sm:$0xff]
    %v996 = vld [vmem:[#allocation13 + $0x658] sm:$0xff]
    %v997 = vld [vmem:[#allocation13 + $0x660] sm:$0xff]
    %v998 = vld [vmem:[#allocation13 + $0x668] sm:$0xff]
    %v999 = vld [vmem:[#allocation13 + $0x670] sm:$0xff]
    %v1000 = vld [vmem:[#allocation13 + $0x678] sm:$0xff]
    %v1001 = vld [vmem:[#allocation13 + $0x680] sm:$0xff]
    %v1002 = vld [vmem:[#allocation13 + $0x688] sm:$0xff]
    %v1003 = vld [vmem:[#allocation13 + $0x690] sm:$0xff]
    %v1004 = vld [vmem:[#allocation13 + $0x698] sm:$0xff]
    %v1005 = vld [vmem:[#allocation13 + $0x6a0] sm:$0xff]
    %v1006 = vld [vmem:[#allocation13 + $0x6a8] sm:$0xff]
    %v1007 = vld [vmem:[#allocation13 + $0x6b0] sm:$0xff]
    %v1008 = vld [vmem:[#allocation13 + $0x6b8] sm:$0xff]
    %v1009 = vld [vmem:[#allocation13 + $0x6c0] sm:$0xff]
    %v1010 = vld [vmem:[#allocation13 + $0x6c8] sm:$0xff]
    %v1011 = vld [vmem:[#allocation13 + $0x6d0] sm:$0xff]
    %v1012 = vld [vmem:[#allocation13 + $0x6d8] sm:$0xff]
    %v1013 = vld [vmem:[#allocation13 + $0x6e0] sm:$0xff]
    %v1014 = vld [vmem:[#allocation13 + $0x6e8] sm:$0xff]
    %v1015 = vld [vmem:[#allocation13 + $0x6f0] sm:$0xff]
    %v1016 = vld [vmem:[#allocation13 + $0x6f8] sm:$0xff]
    %v1017 = vld [vmem:[#allocation13 + $0x700] sm:$0xff]
    %v1018 = vld [vmem:[#allocation13 + $0x708] sm:$0xff]
    %v1019 = vld [vmem:[#allocation13 + $0x710] sm:$0xff]
    %v1020 = vld [vmem:[#allocation13 + $0x718] sm:$0xff]
    %v1021 = vld [vmem:[#allocation13 + $0x720] sm:$0xff]
    %v1022 = vld [vmem:[#allocation13 + $0x728] sm:$0xff]
    %v1023 = vld [vmem:[#allocation13 + $0x730] sm:$0xff]
    %v1024 = vld [vmem:[#allocation13 + $0x738] sm:$0xff]
    %v1025 = vld [vmem:[#allocation13 + $0x740] sm:$0xff]
    %v1026 = vld [vmem:[#allocation13 + $0x748] sm:$0xff]
    %v1027 = vld [vmem:[#allocation13 + $0x750] sm:$0xff]
    %v1028 = vld [vmem:[#allocation13 + $0x758] sm:$0xff]
    %v1029 = vld [vmem:[#allocation13 + $0x760] sm:$0xff]
    %v1030 = vld [vmem:[#allocation13 + $0x768] sm:$0xff]
    %v1031 = vld [vmem:[#allocation13 + $0x770] sm:$0xff]
    %v1032 = vld [vmem:[#allocation13 + $0x778] sm:$0xff]
    %v1033 = vld [vmem:[#allocation13 + $0x780] sm:$0xff]
    %v1034 = vld [vmem:[#allocation13 + $0x788] sm:$0xff]
    %v1035 = vld [vmem:[#allocation13 + $0x790] sm:$0xff]
    %v1036 = vld [vmem:[#allocation13 + $0x798] sm:$0xff]
    %v1037 = vld [vmem:[#allocation13 + $0x7a0] sm:$0xff]
    %v1038 = vld [vmem:[#allocation13 + $0x7a8] sm:$0xff]
    %v1039 = vld [vmem:[#allocation13 + $0x7b0] sm:$0xff]
    %v1040 = vld [vmem:[#allocation13 + $0x7b8] sm:$0xff]
    %v1041 = vld [vmem:[#allocation13 + $0x7c0] sm:$0xff]
    %v1042 = vld [vmem:[#allocation13 + $0x7c8] sm:$0xff]
    %v1043 = vld [vmem:[#allocation13 + $0x7d0] sm:$0xff]
    %v1044 = vld [vmem:[#allocation13 + $0x7d8] sm:$0xff]
    %v1045 = vld [vmem:[#allocation13 + $0x7e0] sm:$0xff]
    %v1046 = vld [vmem:[#allocation13 + $0x7e8] sm:$0xff]
    %v1047 = vld [vmem:[#allocation13 + $0x7f0] sm:$0xff]
    %v1048 = vld [vmem:[#allocation13 + $0x7f8] sm:$0xff]
    %v1049 = vld [vmem:[#allocation13 + $0x800] sm:$0xff]
    %v1050 = vld [vmem:[#allocation13 + $0x808] sm:$0xff]
    %v1051 = vld [vmem:[#allocation13 + $0x810] sm:$0xff]
    %v1052 = vld [vmem:[#allocation13 + $0x818] sm:$0xff]
    %v1053 = vld [vmem:[#allocation13 + $0x820] sm:$0xff]
    %v1054 = vld [vmem:[#allocation13 + $0x828] sm:$0xff]
    %v1055 = vld [vmem:[#allocation13 + $0x830] sm:$0xff]
    %v1056 = vld [vmem:[#allocation13 + $0x838] sm:$0xff]
    %v1057 = vld [vmem:[#allocation13 + $0x840] sm:$0xff]
    %v1058 = vld [vmem:[#allocation13 + $0x848] sm:$0xff]
    %v1059 = vld [vmem:[#allocation13 + $0x850] sm:$0xff]
    %v1060 = vld [vmem:[#allocation13 + $0x858] sm:$0xff]
    %v1061 = vld [vmem:[#allocation13 + $0x860] sm:$0xff]
    %v1062 = vld [vmem:[#allocation13 + $0x868] sm:$0xff]
    %v1063 = vld [vmem:[#allocation13 + $0x870] sm:$0xff]
    %v1064 = vld [vmem:[#allocation13 + $0x878] sm:$0xff]
    %v1065 = vld [vmem:[#allocation13 + $0x880] sm:$0xff]
    %v1066 = vld [vmem:[#allocation13 + $0x888] sm:$0xff]
    %v1067 = vld [vmem:[#allocation13 + $0x890] sm:$0xff]
    %v1068 = vld [vmem:[#allocation13 + $0x898] sm:$0xff]
    %v1069 = vld [vmem:[#allocation13 + $0x8a0] sm:$0xff]
    %v1070 = vld [vmem:[#allocation13 + $0x8a8] sm:$0xff]
    %v1071 = vld [vmem:[#allocation13 + $0x8b0] sm:$0xff]
    %v1072 = vld [vmem:[#allocation13 + $0x8b8] sm:$0xff]
    %v1073 = vld [vmem:[#allocation13 + $0x8c0] sm:$0xff]
    %v1074 = vld [vmem:[#allocation13 + $0x8c8] sm:$0xff]
    %v1075 = vld [vmem:[#allocation13 + $0x8d0] sm:$0xff]
    %v1076 = vld [vmem:[#allocation13 + $0x8d8] sm:$0xff]
    %v1077 = vld [vmem:[#allocation13 + $0x8e0] sm:$0xff]
    %v1078 = vld [vmem:[#allocation13 + $0x8e8] sm:$0xff]
    %v1079 = vld [vmem:[#allocation13 + $0x8f0] sm:$0xff]
    %v1080 = vld [vmem:[#allocation13 + $0x8f8] sm:$0xff]
    %v1081 = vld [vmem:[#allocation13 + $0x900] sm:$0xff]
    %v1082 = vld [vmem:[#allocation13 + $0x908] sm:$0xff]
    %v1083 = vld [vmem:[#allocation13 + $0x910] sm:$0xff]
    %v1084 = vld [vmem:[#allocation13 + $0x918] sm:$0xff]
    %v1085 = vld [vmem:[#allocation13 + $0x920] sm:$0xff]
    %v1086 = vld [vmem:[#allocation13 + $0x928] sm:$0xff]
    %v1087 = vld [vmem:[#allocation13 + $0x930] sm:$0xff]
    %v1088 = vld [vmem:[#allocation13 + $0x938] sm:$0xff]
    %v1089 = vld [vmem:[#allocation13 + $0x940] sm:$0xff]
    %v1090 = vld [vmem:[#allocation13 + $0x948] sm:$0xff]
    %v1091 = vld [vmem:[#allocation13 + $0x950] sm:$0xff]
    %v1092 = vld [vmem:[#allocation13 + $0x958] sm:$0xff]
    %v1093 = vld [vmem:[#allocation13 + $0x960] sm:$0xff]
    %v1094 = vld [vmem:[#allocation13 + $0x968] sm:$0xff]
    %v1095 = vld [vmem:[#allocation13 + $0x970] sm:$0xff]
    %v1096 = vld [vmem:[#allocation13 + $0x978] sm:$0xff]
    %v1097 = vld [vmem:[#allocation13 + $0x980] sm:$0xff]
    %v1098 = vld [vmem:[#allocation13 + $0x988] sm:$0xff]
    %v1099 = vld [vmem:[#allocation13 + $0x990] sm:$0xff]
    %v1100 = vld [vmem:[#allocation13 + $0x998] sm:$0xff]
    %v1101 = vld [vmem:[#allocation13 + $0x9a0] sm:$0xff]
    %v1102 = vld [vmem:[#allocation13 + $0x9a8] sm:$0xff]
    %v1103 = vld [vmem:[#allocation13 + $0x9b0] sm:$0xff]
    %v1104 = vld [vmem:[#allocation13 + $0x9b8] sm:$0xff]
    %v1105 = vld [vmem:[#allocation13 + $0x9c0] sm:$0xff]
    %v1106 = vld [vmem:[#allocation13 + $0x9c8] sm:$0xff]
    %v1107 = vld [vmem:[#allocation13 + $0x9d0] sm:$0xff]
    %v1108 = vld [vmem:[#allocation13 + $0x9d8] sm:$0xff]
    %v1109 = vld [vmem:[#allocation13 + $0x9e0] sm:$0xff]
    %v1110 = vld [vmem:[#allocation13 + $0x9e8] sm:$0xff]
    %v1111 = vld [vmem:[#allocation13 + $0x9f0] sm:$0xff]
    %v1112 = vld [vmem:[#allocation13 + $0x9f8] sm:$0xff]
    %v1113 = vld [vmem:[#allocation13 + $0xa00] sm:$0xff]
    %v1114 = vld [vmem:[#allocation13 + $0xa08] sm:$0xff]
    %v1115 = vld [vmem:[#allocation13 + $0xa10] sm:$0xff]
    %v1116 = vld [vmem:[#allocation13 + $0xa18] sm:$0xff]
    %v1117 = vld [vmem:[#allocation13 + $0xa20] sm:$0xff]
    %v1118 = vld [vmem:[#allocation13 + $0xa28] sm:$0xff]
    %v1119 = vld [vmem:[#allocation13 + $0xa30] sm:$0xff]
    %v1120 = vld [vmem:[#allocation13 + $0xa38] sm:$0xff]
    %v1121 = vld [vmem:[#allocation13 + $0xa40] sm:$0xff]
    %v1122 = vld [vmem:[#allocation13 + $0xa48] sm:$0xff]
    %v1123 = vld [vmem:[#allocation13 + $0xa50] sm:$0xff]
    %v1124 = vld [vmem:[#allocation13 + $0xa58] sm:$0xff]
    %v1125 = vld [vmem:[#allocation13 + $0xa60] sm:$0xff]
    %v1126 = vld [vmem:[#allocation13 + $0xa68] sm:$0xff]
    %v1127 = vld [vmem:[#allocation13 + $0xa70] sm:$0xff]
    %v1128 = vld [vmem:[#allocation13 + $0xa78] sm:$0xff]
    %v1129 = vld [vmem:[#allocation13 + $0xa80] sm:$0xff]
    %v1130 = vld [vmem:[#allocation13 + $0xa88] sm:$0xff]
    %v1131 = vld [vmem:[#allocation13 + $0xa90] sm:$0xff]
    %v1132 = vld [vmem:[#allocation13 + $0xa98] sm:$0xff]
    %v1133 = vld [vmem:[#allocation13 + $0xaa0] sm:$0xff]
    %v1134 = vld [vmem:[#allocation13 + $0xaa8] sm:$0xff]
    %v1135 = vld [vmem:[#allocation13 + $0xab0] sm:$0xff]
    %v1136 = vld [vmem:[#allocation13 + $0xab8] sm:$0xff]
    %v1137 = vld [vmem:[#allocation13 + $0xac0] sm:$0xff]
    %v1138 = vld [vmem:[#allocation13 + $0xac8] sm:$0xff]
    %v1139 = vld [vmem:[#allocation13 + $0xad0] sm:$0xff]
    %v1140 = vld [vmem:[#allocation13 + $0xad8] sm:$0xff]
    %v1141 = vld [vmem:[#allocation13 + $0xae0] sm:$0xff]
    %v1142 = vld [vmem:[#allocation13 + $0xae8] sm:$0xff]
    %v1143 = vld [vmem:[#allocation13 + $0xaf0] sm:$0xff]
    %v1144 = vld [vmem:[#allocation13 + $0xaf8] sm:$0xff]
    %v1145 = vld [vmem:[#allocation13 + $0xb00] sm:$0xff]
    %v1146 = vld [vmem:[#allocation13 + $0xb08] sm:$0xff]
    %v1147 = vld [vmem:[#allocation13 + $0xb10] sm:$0xff]
    %v1148 = vld [vmem:[#allocation13 + $0xb18] sm:$0xff]
    %v1149 = vld [vmem:[#allocation13 + $0xb20] sm:$0xff]
    %v1150 = vld [vmem:[#allocation13 + $0xb28] sm:$0xff]
    %v1151 = vld [vmem:[#allocation13 + $0xb30] sm:$0xff]
    %v1152 = vld [vmem:[#allocation13 + $0xb38] sm:$0xff]
    %v1153 = vld [vmem:[#allocation13 + $0xb40] sm:$0xff]
    %v1154 = vld [vmem:[#allocation13 + $0xb48] sm:$0xff]
    %v1155 = vld [vmem:[#allocation13 + $0xb50] sm:$0xff]
    %v1156 = vld [vmem:[#allocation13 + $0xb58] sm:$0xff]
    %v1157 = vld [vmem:[#allocation13 + $0xb60] sm:$0xff]
    %v1158 = vld [vmem:[#allocation13 + $0xb68] sm:$0xff]
    %v1159 = vld [vmem:[#allocation13 + $0xb70] sm:$0xff]
    %v1160 = vld [vmem:[#allocation13 + $0xb78] sm:$0xff]
    %v1161 = vld [vmem:[#allocation13 + $0xb80] sm:$0xff]
    %v1162 = vld [vmem:[#allocation13 + $0xb88] sm:$0xff]
    %v1163 = vld [vmem:[#allocation13 + $0xb90] sm:$0xff]
    %v1164 = vld [vmem:[#allocation13 + $0xb98] sm:$0xff]
    %v1165 = vld [vmem:[#allocation13 + $0xba0] sm:$0xff]
    %v1166 = vld [vmem:[#allocation13 + $0xba8] sm:$0xff]
    %v1167 = vld [vmem:[#allocation13 + $0xbb0] sm:$0xff]
    %v1168 = vld [vmem:[#allocation13 + $0xbb8] sm:$0xff]
    %v1169 = vld [vmem:[#allocation13 + $0xbc0] sm:$0xff]
    %v1170 = vld [vmem:[#allocation13 + $0xbc8] sm:$0xff]
    %v1171 = vld [vmem:[#allocation13 + $0xbd0] sm:$0xff]
    %v1172 = vld [vmem:[#allocation13 + $0xbd8] sm:$0xff]
    %v1173 = vld [vmem:[#allocation13 + $0xbe0] sm:$0xff]
    %v1174 = vld [vmem:[#allocation13 + $0xbe8] sm:$0xff]
    %v1175 = vld [vmem:[#allocation13 + $0xbf0] sm:$0xff]
    %v1176 = vld [vmem:[#allocation13 + $0xbf8] sm:$0xff]
    %v1177 = vld [vmem:[#allocation14] sm:$0x7]
    %v1179 = vlaneseq
    %v1180 = vshrl.u32 %v1179, 7
    %v1181 = vsub.s32 0, %v1180
    %v1182 = vrot.slane %v1177, %v1181
    %v1183 = vlaneseq
    %v1184 = vshrl.u32 %v1183, 7
    %v1185 = vsub.s32 1, %v1184
    %v1186 = vrot.slane %v1177, %v1185
    %v1187 = vlaneseq
    %v1188 = vshrl.u32 %v1187, 7
    %v1189 = vsub.s32 2, %v1188
    %v1190 = vrot.slane %v1177, %v1189
    %1194 = vmatprep.subr.mxu0 %v794
    %1195 = vmatpush1.msra.mxu0 %v793
    %1196 = vmatprep.subr.mxu0 %v797
    %1197 = vmatpush1.msra.mxu0 %v796
    %1198 = vmatprep.subr.mxu0 %v800
    %1199 = vmatpush1.msra.mxu0 %v799
    %1200 = vmatprep.subr.mxu0 %v803
    %1201 = vmatpush1.msra.mxu0 %v802
    %1202 = vmatprep.subr.mxu0 %v806
    %1203 = vmatpush1.msra.mxu0 %v805
    %1204 = vmatprep.subr.mxu0 %v809
    %1205 = vmatpush1.msra.mxu0 %v808
    %1206 = vmatprep.subr.mxu0 %v812
    %1207 = vmatpush1.msra.mxu0 %v811
    %1208 = vmatprep.subr.mxu0 %v815
    %1209 = vmatpush1.msra.mxu0 %v814
    %1210 = vmatprep.subr.mxu0 %v818
    %1211 = vmatpush1.msra.mxu0 %v817
    %1212 = vmatprep.subr.mxu0 %v821
    %1213 = vmatpush1.msra.mxu0 %v820
    %1214 = vmatprep.subr.mxu0 %v824
    %1215 = vmatpush1.msra.mxu0 %v823
    %1216 = vmatprep.subr.mxu0 %v827
    %1217 = vmatpush1.msra.mxu0 %v826
    %1218 = vmatprep.subr.mxu0 %v830
    %1219 = vmatpush1.msra.mxu0 %v829
    %1220 = vmatprep.subr.mxu0 %v833
    %1221 = vmatpush1.msra.mxu0 %v832
    %1222 = vmatprep.subr.mxu0 %v836
    %1223 = vmatpush1.msra.mxu0 %v835
    %1224 = vmatprep.subr.mxu0 %v839
    %1225 = vmatpush1.msra.mxu0 %v838
    %1226 = vmatprep.subr.mxu0 %v842
    %1227 = vmatpush1.msra.mxu0 %v841
    %1228 = vmatprep.subr.mxu0 %v845
    %1229 = vmatpush1.msra.mxu0 %v844
    %1230 = vmatprep.subr.mxu0 %v848
    %1231 = vmatpush1.msra.mxu0 %v847
    %1232 = vmatprep.subr.mxu0 %v851
    %1233 = vmatpush1.msra.mxu0 %v850
    %1234 = vmatprep.subr.mxu0 %v854
    %1235 = vmatpush1.msra.mxu0 %v853
    %1236 = vmatprep.subr.mxu0 %v857
    %1237 = vmatpush1.msra.mxu0 %v856
    %1238 = vmatprep.subr.mxu0 %v860
    %1239 = vmatpush1.msra.mxu0 %v859
    %1240 = vmatprep.subr.mxu0 %v863
    %1241 = vmatpush1.msra.mxu0 %v862
    %1242 = vmatprep.subr.mxu0 %v866
    %1243 = vmatpush1.msra.mxu0 %v865
    %1244 = vmatprep.subr.mxu0 %v869
    %1245 = vmatpush1.msra.mxu0 %v868
    %1246 = vmatprep.subr.mxu0 %v872
    %1247 = vmatpush1.msra.mxu0 %v871
    %1248 = vmatprep.subr.mxu0 %v875
    %1249 = vmatpush1.msra.mxu0 %v874
    %1250 = vmatprep.subr.mxu0 %v878
    %1251 = vmatpush1.msra.mxu0 %v877
    %1252 = vmatprep.subr.mxu0 %v881
    %1253 = vmatpush1.msra.mxu0 %v880
    %1254 = vmatprep.subr.mxu0 %v884
    %1255 = vmatpush1.msra.mxu0 %v883
    %1256 = vmatprep.subr.mxu0 %v887
    %1257 = vmatpush1.msra.mxu0 %v886
    %1258 = vmatprep.mubr.f32.mxu0 %v786
    %1259 = vmatmul.mubr.f32.gmra.mrb[0].mxu0 %v785
    %v1260 = vpop.f32.mrb[0].mxu0
    %v1261 = vadd.f32 %v1182, %v1260
    %v1262 = vpop.f32.mrb[0].mxu0
    %v1263 = vadd.f32 %v1186, %v1262
    %1264 = vdwg.mxu0
    %1265 = vmatprep.subr.mxu0 %v890
    %1266 = vmatpush1.msra.mxu0 %v889
    %1267 = vmatprep.subr.mxu0 %v893
    %1268 = vmatpush1.msra.mxu0 %v892
    %1269 = vmatprep.subr.mxu0 %v896
    %1270 = vmatpush1.msra.mxu0 %v895
    %1271 = vmatprep.subr.mxu0 %v899
    %1272 = vmatpush1.msra.mxu0 %v898
    %1273 = vmatprep.subr.mxu0 %v902
    %1274 = vmatpush1.msra.mxu0 %v901
    %1275 = vmatprep.subr.mxu0 %v905
    %1276 = vmatpush1.msra.mxu0 %v904
    %1277 = vmatprep.subr.mxu0 %v908
    %1278 = vmatpush1.msra.mxu0 %v907
    %1279 = vmatprep.subr.mxu0 %v911
    %1280 = vmatpush1.msra.mxu0 %v910
    %1281 = vmatprep.subr.mxu0 %v914
    %1282 = vmatpush1.msra.mxu0 %v913
    %1283 = vmatprep.subr.mxu0 %v917
    %1284 = vmatpush1.msra.mxu0 %v916
    %1285 = vmatprep.subr.mxu0 %v920
    %1286 = vmatpush1.msra.mxu0 %v919
    %1287 = vmatprep.subr.mxu0 %v923
    %1288 = vmatpush1.msra.mxu0 %v922
    %1289 = vmatprep.subr.mxu0 %v926
    %1290 = vmatpush1.msra.mxu0 %v925
    %1291 = vmatprep.subr.mxu0 %v929
    %1292 = vmatpush1.msra.mxu0 %v928
    %1293 = vmatprep.subr.mxu0 %v932
    %1294 = vmatpush1.msra.mxu0 %v931
    %1295 = vmatprep.subr.mxu0 %v935
    %1296 = vmatpush1.msra.mxu0 %v934
    %1297 = vmatprep.subr.mxu0 %v938
    %1298 = vmatpush1.msra.mxu0 %v937
    %1299 = vmatprep.subr.mxu0 %v941
    %1300 = vmatpush1.msra.mxu0 %v940
    %1301 = vmatprep.subr.mxu0 %v944
    %1302 = vmatpush1.msra.mxu0 %v943
    %1303 = vmatprep.subr.mxu0 %v947
    %1304 = vmatpush1.msra.mxu0 %v946
    %1305 = vmatprep.subr.mxu0 %v950
    %1306 = vmatpush1.msra.mxu0 %v949
    %1307 = vmatprep.subr.mxu0 %v953
    %1308 = vmatpush1.msra.mxu0 %v952
    %1309 = vmatprep.subr.mxu0 %v956
    %1310 = vmatpush1.msra.mxu0 %v955
    %1311 = vmatprep.subr.mxu0 %v959
    %1312 = vmatpush1.msra.mxu0 %v958
    %1313 = vmatprep.subr.mxu0 %v962
    %1314 = vmatpush1.msra.mxu0 %v961
    %1315 = vmatprep.subr.mxu0 %v965
    %1316 = vmatpush1.msra.mxu0 %v964
    %1317 = vmatprep.subr.mxu0 %v968
    %1318 = vmatpush1.msra.mxu0 %v967
    %1319 = vmatprep.subr.mxu0 %v971
    %1320 = vmatpush1.msra.mxu0 %v970
    %1321 = vmatprep.subr.mxu0 %v974
    %1322 = vmatpush1.msra.mxu0 %v973
    %1323 = vmatprep.subr.mxu0 %v977
    %1324 = vmatpush1.msra.mxu0 %v976
    %1325 = vmatprep.subr.mxu0 %v980
    %1326 = vmatpush1.msra.mxu0 %v979
    %1327 = vmatprep.subr.mxu0 %v983
    %1328 = vmatpush1.msra.mxu0 %v982
    %1329 = vmatprep.mubr.f32.mxu0 %v788
    %1330 = vmatmul.mubr.f32.gmra.mrb[0].mxu0 %v787
    %v1331 = vpop.f32.mrb[0].mxu0
    %v1332 = vadd.f32 %v1261, %v1331
    %v1333 = vpop.f32.mrb[0].mxu0
    %v1334 = vadd.f32 %v1263, %v1333
    %1335 = vdwg.mxu0
    %1336 = vmatprep.subr.mxu0 %v986
    %1337 = vmatpush1.msra.mxu0 %v985
    %1338 = vmatprep.subr.mxu0 %v989
    %1339 = vmatpush1.msra.mxu0 %v988
    %1340 = vmatprep.subr.mxu0 %v992
    %1341 = vmatpush1.msra.mxu0 %v991
    %1342 = vmatprep.subr.mxu0 %v995
    %1343 = vmatpush1.msra.mxu0 %v994
    %1344 = vmatprep.subr.mxu0 %v998
    %1345 = vmatpush1.msra.mxu0 %v997
    %1346 = vmatprep.subr.mxu0 %v1001
    %1347 = vmatpush1.msra.mxu0 %v1000
    %1348 = vmatprep.subr.mxu0 %v1004
    %1349 = vmatpush1.msra.mxu0 %v1003
    %1350 = vmatprep.subr.mxu0 %v1007
    %1351 = vmatpush1.msra.mxu0 %v1006
    %1352 = vmatprep.subr.mxu0 %v1010
    %1353 = vmatpush1.msra.mxu0 %v1009
    %1354 = vmatprep.subr.mxu0 %v1013
    %1355 = vmatpush1.msra.mxu0 %v1012
    %1356 = vmatprep.subr.mxu0 %v1016
    %1357 = vmatpush1.msra.mxu0 %v1015
    %1358 = vmatprep.subr.mxu0 %v1019
    %1359 = vmatpush1.msra.mxu0 %v1018
    %1360 = vmatprep.subr.mxu0 %v1022
    %1361 = vmatpush1.msra.mxu0 %v1021
    %1362 = vmatprep.subr.mxu0 %v1025
    %1363 = vmatpush1.msra.mxu0 %v1024
    %1364 = vmatprep.subr.mxu0 %v1028
    %1365 = vmatpush1.msra.mxu0 %v1027
    %1366 = vmatprep.subr.mxu0 %v1031
    %1367 = vmatpush1.msra.mxu0 %v1030
    %1368 = vmatprep.subr.mxu0 %v1034
    %1369 = vmatpush1.msra.mxu0 %v1033
    %1370 = vmatprep.subr.mxu0 %v1037
    %1371 = vmatpush1.msra.mxu0 %v1036
    %1372 = vmatprep.subr.mxu0 %v1040
    %1373 = vmatpush1.msra.mxu0 %v1039
    %1374 = vmatprep.subr.mxu0 %v1043
    %1375 = vmatpush1.msra.mxu0 %v1042
    %1376 = vmatprep.subr.mxu0 %v1046
    %1377 = vmatpush1.msra.mxu0 %v1045
    %1378 = vmatprep.subr.mxu0 %v1049
    %1379 = vmatpush1.msra.mxu0 %v1048
    %1380 = vmatprep.subr.mxu0 %v1052
    %1381 = vmatpush1.msra.mxu0 %v1051
    %1382 = vmatprep.subr.mxu0 %v1055
    %1383 = vmatpush1.msra.mxu0 %v1054
    %1384 = vmatprep.subr.mxu0 %v1058
    %1385 = vmatpush1.msra.mxu0 %v1057
    %1386 = vmatprep.subr.mxu0 %v1061
    %1387 = vmatpush1.msra.mxu0 %v1060
    %1388 = vmatprep.subr.mxu0 %v1064
    %1389 = vmatpush1.msra.mxu0 %v1063
    %1390 = vmatprep.subr.mxu0 %v1067
    %1391 = vmatpush1.msra.mxu0 %v1066
    %1392 = vmatprep.subr.mxu0 %v1070
    %1393 = vmatpush1.msra.mxu0 %v1069
    %1394 = vmatprep.subr.mxu0 %v1073
    %1395 = vmatpush1.msra.mxu0 %v1072
    %1396 = vmatprep.subr.mxu0 %v1076
    %1397 = vmatpush1.msra.mxu0 %v1075
    %1398 = vmatprep.subr.mxu0 %v1079
    %1399 = vmatpush1.msra.mxu0 %v1078
    %1400 = vmatprep.mubr.f32.mxu0 %v790
    %1401 = vmatmul.mubr.f32.gmra.mrb[0].mxu0 %v789
    %v1402 = vpop.f32.mrb[0].mxu0
    %v1403 = vadd.f32 %v1332, %v1402
    %v1404 = vpop.f32.mrb[0].mxu0
    %v1405 = vadd.f32 %v1334, %v1404
    %1406 = vdwg.mxu0
    %1407 = vmatprep.subr.mxu0 %v1082
    %1408 = vmatpush1.msra.mxu0 %v1081
    %1409 = vmatprep.subr.mxu0 %v1085
    %1410 = vmatpush1.msra.mxu0 %v1084
    %1411 = vmatprep.subr.mxu0 %v1088
    %1412 = vmatpush1.msra.mxu0 %v1087
    %1413 = vmatprep.subr.mxu0 %v1091
    %1414 = vmatpush1.msra.mxu0 %v1090
    %1415 = vmatprep.subr.mxu0 %v1094
    %1416 = vmatpush1.msra.mxu0 %v1093
    %1417 = vmatprep.subr.mxu0 %v1097
    %1418 = vmatpush1.msra.mxu0 %v1096
    %1419 = vmatprep.subr.mxu0 %v1100
    %1420 = vmatpush1.msra.mxu0 %v1099
    %1421 = vmatprep.subr.mxu0 %v1103
    %1422 = vmatpush1.msra.mxu0 %v1102
    %1423 = vmatprep.subr.mxu0 %v1106
    %1424 = vmatpush1.msra.mxu0 %v1105
    %1425 = vmatprep.subr.mxu0 %v1109
    %1426 = vmatpush1.msra.mxu0 %v1108
    %1427 = vmatprep.subr.mxu0 %v1112
    %1428 = vmatpush1.msra.mxu0 %v1111
    %1429 = vmatprep.subr.mxu0 %v1115
    %1430 = vmatpush1.msra.mxu0 %v1114
    %1431 = vmatprep.subr.mxu0 %v1118
    %1432 = vmatpush1.msra.mxu0 %v1117
    %1433 = vmatprep.subr.mxu0 %v1121
    %1434 = vmatpush1.msra.mxu0 %v1120
    %1435 = vmatprep.subr.mxu0 %v1124
    %1436 = vmatpush1.msra.mxu0 %v1123
    %1437 = vmatprep.subr.mxu0 %v1127
    %1438 = vmatpush1.msra.mxu0 %v1126
    %1439 = vmatprep.subr.mxu0 %v1130
    %1440 = vmatpush1.msra.mxu0 %v1129
    %1441 = vmatprep.subr.mxu0 %v1133
    %1442 = vmatpush1.msra.mxu0 %v1132
    %1443 = vmatprep.subr.mxu0 %v1136
    %1444 = vmatpush1.msra.mxu0 %v1135
    %1445 = vmatprep.subr.mxu0 %v1139
    %1446 = vmatpush1.msra.mxu0 %v1138
    %1447 = vmatprep.subr.mxu0 %v1142
    %1448 = vmatpush1.msra.mxu0 %v1141
    %1449 = vmatprep.subr.mxu0 %v1145
    %1450 = vmatpush1.msra.mxu0 %v1144
    %1451 = vmatprep.subr.mxu0 %v1148
    %1452 = vmatpush1.msra.mxu0 %v1147
    %1453 = vmatprep.subr.mxu0 %v1151
    %1454 = vmatpush1.msra.mxu0 %v1150
    %1455 = vmatprep.subr.mxu0 %v1154
    %1456 = vmatpush1.msra.mxu0 %v1153
    %1457 = vmatprep.subr.mxu0 %v1157
    %1458 = vmatpush1.msra.mxu0 %v1156
    %1459 = vmatprep.subr.mxu0 %v1160
    %1460 = vmatpush1.msra.mxu0 %v1159
    %1461 = vmatprep.subr.mxu0 %v1163
    %1462 = vmatpush1.msra.mxu0 %v1162
    %1463 = vmatprep.subr.mxu0 %v1166
    %1464 = vmatpush1.msra.mxu0 %v1165
    %1465 = vmatprep.subr.mxu0 %v1169
    %1466 = vmatpush1.msra.mxu0 %v1168
    %1467 = vmatprep.subr.mxu0 %v1172
    %1468 = vmatpush1.msra.mxu0 %v1171
    %1469 = vmatprep.subr.mxu0 %v1175
    %1470 = vmatpush1.msra.mxu0 %v1174
    %1471 = vmatprep.mubr.f32.mxu0 %v792
    %1472 = vmatmul.mubr.f32.gmra.mrb[0].mxu0 %v791
    %v1473 = vpop.f32.mrb[0].mxu0
    %v1474 = vadd.f32 %v1403, %v1473
    %v1475 = vpop.f32.mrb[0].mxu0
    %v1476 = vadd.f32 %v1405, %v1475
    %1477 = vdwg.mxu0
    %1478 = vmatprep.subr.mxu0 0.0
    %1479 = vmatpush1.msra.mxu0 %v795
    %1480 = vmatprep.subr.mxu0 0.0
    %1481 = vmatpush1.msra.mxu0 %v798
    %1482 = vmatprep.subr.mxu0 0.0
    %1483 = vmatpush1.msra.mxu0 %v801
    %1484 = vmatprep.subr.mxu0 0.0
    %1485 = vmatpush1.msra.mxu0 %v804
    %1486 = vmatprep.subr.mxu0 0.0
    %1487 = vmatpush1.msra.mxu0 %v807
    %1488 = vmatprep.subr.mxu0 0.0
    %1489 = vmatpush1.msra.mxu0 %v810
    %1490 = vmatprep.subr.mxu0 0.0
    %1491 = vmatpush1.msra.mxu0 %v813
    %1492 = vmatprep.subr.mxu0 0.0
    %1493 = vmatpush1.msra.mxu0 %v816
    %1494 = vmatprep.subr.mxu0 0.0
    %1495 = vmatpush1.msra.mxu0 %v819
    %1496 = vmatprep.subr.mxu0 0.0
    %1497 = vmatpush1.msra.mxu0 %v822
    %1498 = vmatprep.subr.mxu0 0.0
    %1499 = vmatpush1.msra.mxu0 %v825
    %1500 = vmatprep.subr.mxu0 0.0
    %1501 = vmatpush1.msra.mxu0 %v828
    %1502 = vmatprep.subr.mxu0 0.0
    %1503 = vmatpush1.msra.mxu0 %v831
    %1504 = vmatprep.subr.mxu0 0.0
    %1505 = vmatpush1.msra.mxu0 %v834
    %1506 = vmatprep.subr.mxu0 0.0
    %1507 = vmatpush1.msra.mxu0 %v837
    %1508 = vmatprep.subr.mxu0 0.0
    %1509 = vmatpush1.msra.mxu0 %v840
    %1510 = vmatprep.subr.mxu0 0.0
    %1511 = vmatpush1.msra.mxu0 %v843
    %1512 = vmatprep.subr.mxu0 0.0
    %1513 = vmatpush1.msra.mxu0 %v846
    %1514 = vmatprep.subr.mxu0 0.0
    %1515 = vmatpush1.msra.mxu0 %v849
    %1516 = vmatprep.subr.mxu0 0.0
    %1517 = vmatpush1.msra.mxu0 %v852
    %1518 = vmatprep.subr.mxu0 0.0
    %1519 = vmatpush1.msra.mxu0 %v855
    %1520 = vmatprep.subr.mxu0 0.0
    %1521 = vmatpush1.msra.mxu0 %v858
    %1522 = vmatprep.subr.mxu0 0.0
    %1523 = vmatpush1.msra.mxu0 %v861
    %1524 = vmatprep.subr.mxu0 0.0
    %1525 = vmatpush1.msra.mxu0 %v864
    %1526 = vmatprep.subr.mxu0 0.0
    %1527 = vmatpush1.msra.mxu0 %v867
    %1528 = vmatprep.subr.mxu0 0.0
    %1529 = vmatpush1.msra.mxu0 %v870
    %1530 = vmatprep.subr.mxu0 0.0
    %1531 = vmatpush1.msra.mxu0 %v873
    %1532 = vmatprep.subr.mxu0 0.0
    %1533 = vmatpush1.msra.mxu0 %v876
    %1534 = vmatprep.subr.mxu0 0.0
    %1535 = vmatpush1.msra.mxu0 %v879
    %1536 = vmatprep.subr.mxu0 0.0
    %1537 = vmatpush1.msra.mxu0 %v882
    %1538 = vmatprep.subr.mxu0 0.0
    %1539 = vmatpush1.msra.mxu0 %v885
    %1540 = vmatprep.subr.mxu0 0.0
    %1541 = vmatpush1.msra.mxu0 %v888
    %1542 = vmatprep.mubr.f32.mxu0 %v786
    %1543 = vmatmul.mubr.f32.gmra.mrb[0].mxu0 %v785
    %v1544 = vpop.f32.mrb[0].mxu0
    %v1545 = vadd.f32 %v1190, %v1544
    %v1546 = vpop.f32.mrb[0].mxu0
    %1547 = vdwg.mxu0
    %1548 = vmatprep.subr.mxu0 0.0
    %1549 = vmatpush1.msra.mxu0 %v891
    %1550 = vmatprep.subr.mxu0 0.0
    %1551 = vmatpush1.msra.mxu0 %v894
    %1552 = vmatprep.subr.mxu0 0.0
    %1553 = vmatpush1.msra.mxu0 %v897
    %1554 = vmatprep.subr.mxu0 0.0
    %1555 = vmatpush1.msra.mxu0 %v900
    %1556 = vmatprep.subr.mxu0 0.0
    %1557 = vmatpush1.msra.mxu0 %v903
    %1558 = vmatprep.subr.mxu0 0.0
    %1559 = vmatpush1.msra.mxu0 %v906
    %1560 = vmatprep.subr.mxu0 0.0
    %1561 = vmatpush1.msra.mxu0 %v909
    %1562 = vmatprep.subr.mxu0 0.0
    %1563 = vmatpush1.msra.mxu0 %v912
    %1564 = vmatprep.subr.mxu0 0.0
    %1565 = vmatpush1.msra.mxu0 %v915
    %1566 = vmatprep.subr.mxu0 0.0
    %1567 = vmatpush1.msra.mxu0 %v918
    %1568 = vmatprep.subr.mxu0 0.0
    %1569 = vmatpush1.msra.mxu0 %v921
    %1570 = vmatprep.subr.mxu0 0.0
    %1571 = vmatpush1.msra.mxu0 %v924
    %1572 = vmatprep.subr.mxu0 0.0
    %1573 = vmatpush1.msra.mxu0 %v927
    %1574 = vmatprep.subr.mxu0 0.0
    %1575 = vmatpush1.msra.mxu0 %v930
    %1576 = vmatprep.subr.mxu0 0.0
    %1577 = vmatpush1.msra.mxu0 %v933
    %1578 = vmatprep.subr.mxu0 0.0
    %1579 = vmatpush1.msra.mxu0 %v936
    %1580 = vmatprep.subr.mxu0 0.0
    %1581 = vmatpush1.msra.mxu0 %v939
    %1582 = vmatprep.subr.mxu0 0.0
    %1583 = vmatpush1.msra.mxu0 %v942
    %1584 = vmatprep.subr.mxu0 0.0
    %1585 = vmatpush1.msra.mxu0 %v945
    %1586 = vmatprep.subr.mxu0 0.0
    %1587 = vmatpush1.msra.mxu0 %v948
    %1588 = vmatprep.subr.mxu0 0.0
    %1589 = vmatpush1.msra.mxu0 %v951
    %1590 = vmatprep.subr.mxu0 0.0
    %1591 = vmatpush1.msra.mxu0 %v954
    %1592 = vmatprep.subr.mxu0 0.0
    %1593 = vmatpush1.msra.mxu0 %v957
    %1594 = vmatprep.subr.mxu0 0.0
    %1595 = vmatpush1.msra.mxu0 %v960
    %1596 = vmatprep.subr.mxu0 0.0
    %1597 = vmatpush1.msra.mxu0 %v963
    %1598 = vmatprep.subr.mxu0 0.0
    %1599 = vmatpush1.msra.mxu0 %v966
    %1600 = vmatprep.subr.mxu0 0.0
    %1601 = vmatpush1.msra.mxu0 %v969
    %1602 = vmatprep.subr.mxu0 0.0
    %1603 = vmatpush1.msra.mxu0 %v972
    %1604 = vmatprep.subr.mxu0 0.0
    %1605 = vmatpush1.msra.mxu0 %v975
    %1606 = vmatprep.subr.mxu0 0.0
    %1607 = vmatpush1.msra.mxu0 %v978
    %1608 = vmatprep.subr.mxu0 0.0
    %1609 = vmatpush1.msra.mxu0 %v981
    %1610 = vmatprep.subr.mxu0 0.0
    %1611 = vmatpush1.msra.mxu0 %v984
    %1612 = vmatprep.mubr.f32.mxu0 %v788
    %1613 = vmatmul.mubr.f32.gmra.mrb[0].mxu0 %v787
    %v1614 = vpop.f32.mrb[0].mxu0
    %v1615 = vadd.f32 %v1545, %v1614
    %v1616 = vpop.f32.mrb[0].mxu0
    %1617 = vdwg.mxu0
    %1618 = vmatprep.subr.mxu0 0.0
    %1619 = vmatpush1.msra.mxu0 %v987
    %1620 = vmatprep.subr.mxu0 0.0
    %1621 = vmatpush1.msra.mxu0 %v990
    %1622 = vmatprep.subr.mxu0 0.0
    %1623 = vmatpush1.msra.mxu0 %v993
    %1624 = vmatprep.subr.mxu0 0.0
    %1625 = vmatpush1.msra.mxu0 %v996
    %1626 = vmatprep.subr.mxu0 0.0
    %1627 = vmatpush1.msra.mxu0 %v999
    %1628 = vmatprep.subr.mxu0 0.0
    %1629 = vmatpush1.msra.mxu0 %v1002
    %1630 = vmatprep.subr.mxu0 0.0
    %1631 = vmatpush1.msra.mxu0 %v1005
    %1632 = vmatprep.subr.mxu0 0.0
    %1633 = vmatpush1.msra.mxu0 %v1008
    %1634 = vmatprep.subr.mxu0 0.0
    %1635 = vmatpush1.msra.mxu0 %v1011
    %1636 = vmatprep.subr.mxu0 0.0
    %1637 = vmatpush1.msra.mxu0 %v1014
    %1638 = vmatprep.subr.mxu0 0.0
    %1639 = vmatpush1.msra.mxu0 %v1017
    %1640 = vmatprep.subr.mxu0 0.0
    %1641 = vmatpush1.msra.mxu0 %v1020
    %1642 = vmatprep.subr.mxu0 0.0
    %1643 = vmatpush1.msra.mxu0 %v1023
    %1644 = vmatprep.subr.mxu0 0.0
    %1645 = vmatpush1.msra.mxu0 %v1026
    %1646 = vmatprep.subr.mxu0 0.0
    %1647 = vmatpush1.msra.mxu0 %v1029
    %1648 = vmatprep.subr.mxu0 0.0
    %1649 = vmatpush1.msra.mxu0 %v1032
    %1650 = vmatprep.subr.mxu0 0.0
    %1651 = vmatpush1.msra.mxu0 %v1035
    %1652 = vmatprep.subr.mxu0 0.0
    %1653 = vmatpush1.msra.mxu0 %v1038
    %1654 = vmatprep.subr.mxu0 0.0
    %1655 = vmatpush1.msra.mxu0 %v1041
    %1656 = vmatprep.subr.mxu0 0.0
    %1657 = vmatpush1.msra.mxu0 %v1044
    %1658 = vmatprep.subr.mxu0 0.0
    %1659 = vmatpush1.msra.mxu0 %v1047
    %1660 = vmatprep.subr.mxu0 0.0
    %1661 = vmatpush1.msra.mxu0 %v1050
    %1662 = vmatprep.subr.mxu0 0.0
    %1663 = vmatpush1.msra.mxu0 %v1053
    %1664 = vmatprep.subr.mxu0 0.0
    %1665 = vmatpush1.msra.mxu0 %v1056
    %1666 = vmatprep.subr.mxu0 0.0
    %1667 = vmatpush1.msra.mxu0 %v1059
    %1668 = vmatprep.subr.mxu0 0.0
    %1669 = vmatpush1.msra.mxu0 %v1062
    %1670 = vmatprep.subr.mxu0 0.0
    %1671 = vmatpush1.msra.mxu0 %v1065
    %1672 = vmatprep.subr.mxu0 0.0
    %1673 = vmatpush1.msra.mxu0 %v1068
    %1674 = vmatprep.subr.mxu0 0.0
    %1675 = vmatpush1.msra.mxu0 %v1071
    %1676 = vmatprep.subr.mxu0 0.0
    %1677 = vmatpush1.msra.mxu0 %v1074
    %1678 = vmatprep.subr.mxu0 0.0
    %1679 = vmatpush1.msra.mxu0 %v1077
    %1680 = vmatprep.subr.mxu0 0.0
    %1681 = vmatpush1.msra.mxu0 %v1080
    %1682 = vmatprep.mubr.f32.mxu0 %v790
    %1683 = vmatmul.mubr.f32.gmra.mrb[0].mxu0 %v789
    %v1684 = vpop.f32.mrb[0].mxu0
    %v1685 = vadd.f32 %v1615, %v1684
    %v1686 = vpop.f32.mrb[0].mxu0
    %1687 = vdwg.mxu0
    %1688 = vmatprep.subr.mxu0 0.0
    %1689 = vmatpush1.msra.mxu0 %v1083
    %1690 = vmatprep.subr.mxu0 0.0
    %1691 = vmatpush1.msra.mxu0 %v1086
    %1692 = vmatprep.subr.mxu0 0.0
    %1693 = vmatpush1.msra.mxu0 %v1089
    %1694 = vmatprep.subr.mxu0 0.0
    %1695 = vmatpush1.msra.mxu0 %v1092
    %1696 = vmatprep.subr.mxu0 0.0
    %1697 = vmatpush1.msra.mxu0 %v1095
    %1698 = vmatprep.subr.mxu0 0.0
    %1699 = vmatpush1.msra.mxu0 %v1098
    %1700 = vmatprep.subr.mxu0 0.0
    %1701 = vmatpush1.msra.mxu0 %v1101
    %1702 = vmatprep.subr.mxu0 0.0
    %1703 = vmatpush1.msra.mxu0 %v1104
    %1704 = vmatprep.subr.mxu0 0.0
    %1705 = vmatpush1.msra.mxu0 %v1107
    %1706 = vmatprep.subr.mxu0 0.0
    %1707 = vmatpush1.msra.mxu0 %v1110
    %1708 = vmatprep.subr.mxu0 0.0
    %1709 = vmatpush1.msra.mxu0 %v1113
    %1710 = vmatprep.subr.mxu0 0.0
    %1711 = vmatpush1.msra.mxu0 %v1116
    %1712 = vmatprep.subr.mxu0 0.0
    %1713 = vmatpush1.msra.mxu0 %v1119
    %1714 = vmatprep.subr.mxu0 0.0
    %1715 = vmatpush1.msra.mxu0 %v1122
    %1716 = vmatprep.subr.mxu0 0.0
    %1717 = vmatpush1.msra.mxu0 %v1125
    %1718 = vmatprep.subr.mxu0 0.0
    %1719 = vmatpush1.msra.mxu0 %v1128
    %1720 = vmatprep.subr.mxu0 0.0
    %1721 = vmatpush1.msra.mxu0 %v1131
    %1722 = vmatprep.subr.mxu0 0.0
    %1723 = vmatpush1.msra.mxu0 %v1134
    %1724 = vmatprep.subr.mxu0 0.0
    %1725 = vmatpush1.msra.mxu0 %v1137
    %1726 = vmatprep.subr.mxu0 0.0
    %1727 = vmatpush1.msra.mxu0 %v1140
    %1728 = vmatprep.subr.mxu0 0.0
    %1729 = vmatpush1.msra.mxu0 %v1143
    %1730 = vmatprep.subr.mxu0 0.0
    %1731 = vmatpush1.msra.mxu0 %v1146
    %1732 = vmatprep.subr.mxu0 0.0
    %1733 = vmatpush1.msra.mxu0 %v1149
    %1734 = vmatprep.subr.mxu0 0.0
    %1735 = vmatpush1.msra.mxu0 %v1152
    %1736 = vmatprep.subr.mxu0 0.0
    %1737 = vmatpush1.msra.mxu0 %v1155
    %1738 = vmatprep.subr.mxu0 0.0
    %1739 = vmatpush1.msra.mxu0 %v1158
    %1740 = vmatprep.subr.mxu0 0.0
    %1741 = vmatpush1.msra.mxu0 %v1161
    %1742 = vmatprep.subr.mxu0 0.0
    %1743 = vmatpush1.msra.mxu0 %v1164
    %1744 = vmatprep.subr.mxu0 0.0
    %1745 = vmatpush1.msra.mxu0 %v1167
    %1746 = vmatprep.subr.mxu0 0.0
    %1747 = vmatpush1.msra.mxu0 %v1170
    %1748 = vmatprep.subr.mxu0 0.0
    %1749 = vmatpush1.msra.mxu0 %v1173
    %1750 = vmatprep.subr.mxu0 0.0
    %1751 = vmatpush1.msra.mxu0 %v1176
    %1752 = vmatprep.mubr.f32.mxu0 %v792
    %1753 = vmatmul.mubr.f32.gmra.mrb[0].mxu0 %v791
    %v1754 = vpop.f32.mrb[0].mxu0
    %v1755 = vadd.f32 %v1685, %v1754
    %v1756 = vpop.f32.mrb[0].mxu0
    %1757 = vdwg.mxu0
    %v1758 = vtanh.pop %v1474
    %v1759 = vtanh.pop %v1476
    %v1760 = vtanh.pop %v1755
    %v1764 = vcombine.low %v1758, %v1759
    %v1766 = vunpack.c.l.s4 1983009808
    %v1767 = vunpack.c.0.s8 %v1766
    %v1768 = vlaneseq
    %v1769 = vshrl.u32 %v1768, 7
    %v1770 = vsub.s32 %v1767, %v1769
    %v1771 = vrot.slane %v1764, %v1770
    %v1773 = vunpack.c.l.s4 1983009808
    %v1774 = vunpack.c.0.s8 %v1773
    %v1775 = vlaneseq
    %v1776 = vshrl.u32 %v1775, 7
    %v1777 = vsub.s32 %v1774, %v1776
    %v1778 = vrot.slane %v1760, %v1777
    %v1779 = vcombine.low %v1771, %v1778
    %1781 = vst [vmem:[#allocation16] sm:$0x3f] %v1779
    // Predicated region
    $region70: #{_decoder_apply.1} parent=1 // pred_check
      _
    $region71: #{_decoder_apply.1} parent=1 // pred_check_branch
      %1783 = sbr.rel (0) target = $region73
    $region72: #{_decoder_apply.1} parent=1 // pred_region
      %s1785 = ssub.s32 96, 96
      %1786 = vsyncadd [#allocation4], %s1785
      %s1788 = sshll.u32 [#allocation16], 4
      %s1789 = int_to_ptr.vmem [resolvable:$true] %s1788
      %1791 = dma.vmem_to_hbm [thread:$0]  %s1789, 96, %s9, [#allocation4]
    $region73: #{_decoder_apply.1} parent=1 // pred_fallthru
      _
    // Predicated region
    $region74: #{_decoder_apply.1} parent=1 // pred_check
      _
    $region75: #{_decoder_apply.1} parent=1 // pred_check_branch
      %1793 = sbr.rel (0) target = $region77
    $region76: #{_decoder_apply.1} parent=1 // pred_region
      %1794 = dma.done [#allocation4], 96
    $region77: #{_decoder_apply.1} parent=1 // pred_fallthru
      _
    %1795 = vsyncpa [#allocation3], 1
    %1796 = vsyncpa [#allocation6], 1
    %1797 = vsyncpa [#allocation9], 1
    %1798 = vsyncpa [#allocation12], 1
    %1799 = vsyncpa [#allocation15], 1
    %1800 = vsyncpa [#allocation4], 1

</llo_original>
